<compile_context>
chip_gen: v5e
topology: v5e:2x2
jax: 0.10.0
libtpu: 0.0.40
codegen_flags: <defaults>
</compile_context>

<pallas_src>
from functools import partial

import jax
import jax.numpy as jnp
from jax.experimental import pallas as pl
from jax.experimental.pallas import tpu as pltpu


# ----------------------------------------------------------------------------
# Fused iniconv kernel.
# ----------------------------------------------------------------------------
def _iniconv_kernel(x_ref, y_ref, wmask_ref, w1_ref, w2_ref, b2_ref,
                    w3_ref, b3_ref, o_ref, *, H, W, neg_slope):
    HW = H * W
    wmask = wmask_ref[...]                       # (2, HW): kw=0 / kw=2 masks
    col_masks = (wmask[0:1, :], None, wmask[1:2, :])

    def lrelu(v):
        return jnp.where(v >= 0, v, neg_slope * v)

    def im2col(act):
        # act: (C, HW) f32, flat index p = y*W + x.  Returns (9*C, HW) f32;
        # row block t = kh*3 + kw holds the activation shifted by tap (kh, kw)
        # of a 3x3 / pad=1 conv.  H (row) boundaries fall into the zero
        # extension; W (column) boundaries are zeroed by the per-kw masks.
        C = act.shape[0]
        z = jnp.zeros((C, W + 1), jnp.float32)
        ext = jnp.concatenate([z, act, z], axis=1)        # (C, HW + 2W + 2)
        cols = []
        for kh in range(3):
            for kw in range(3):
                off = (W + 1) + (kh - 1) * W + (kw - 1)   # static lane offset
                patch = ext[:, off:off + HW]              # (C, HW)
                m = col_masks[kw]
                if m is not None:
                    patch = patch * m
                cols.append(patch)
        return jnp.concatenate(cols, axis=0)              # (9*C, HW)

    def conv(act, wm):
        # Single MXU matmul per conv: bf16 (Cout, 9*C) @ (9*C, HW) -> f32.
        col = im2col(act).astype(jnp.bfloat16)
        return jnp.dot(wm, col, preferred_element_type=jnp.float32)

    w1 = w1_ref[...]                             # (Cout, 9*Cin)   bf16
    w2 = w2_ref[...]                             # (Cout, 9*Cout)  bf16 (BN folded)
    w3 = w3_ref[...]                             # (Cout, 18*Cout) bf16 (BN folded)
    b2 = b2_ref[...]                             # (Cout, 1) f32
    b3 = b3_ref[...]                             # (Cout, 1) f32

    branch_cols = []
    for in_ref in (x_ref, y_ref):                # shared conv1 -> conv2
        a = in_ref[0].astype(jnp.float32)        # (Cin, HW)
        h = lrelu(conv(a, w1))                   # conv1: no BN, no dropout
        h = lrelu(conv(h, w2) + b2)              # conv2: folded eval-mode BN
        branch_cols.append(im2col(h))            # (9*Cout, HW)

    # torch.cat(dim=1) == stacking both branches on the contraction axis of
    # the out-conv matmul.  Dropout2d(0.2) is identity in eval mode.
    col3 = jnp.concatenate(branch_cols, axis=0).astype(jnp.bfloat16)
    out = lrelu(jnp.dot(w3, col3, preferred_element_type=jnp.float32) + b3)
    o_ref[...] = out[None].astype(o_ref.dtype)   # (1, Cout, HW), unmasked store


# ----------------------------------------------------------------------------
# Wrapper: NCHW in / NCHW out, flat lane-dense layout inside the kernel.
# ----------------------------------------------------------------------------
def iniconv_forward(x_nchw, y_nchw, params, *, neg_slope=0.2):
    N, Cin, H, W = x_nchw.shape
    Cout = params["b2"].shape[0]
    HW = H * W

    # Pure metadata reshapes -- no padding / extra HBM copies in the wrapper.
    xf = x_nchw.reshape(N, Cin, HW)
    yf = y_nchw.reshape(N, Cin, HW)

    # Tiny constant input: W-boundary masks for the kw=0 / kw=2 taps.
    xcol = jnp.arange(HW, dtype=jnp.int32) % W
    wmask = jnp.stack([(xcol >= 1), (xcol <= W - 2)]).astype(jnp.float32)

    kernel = partial(_iniconv_kernel, H=H, W=W, neg_slope=neg_slope)
    rep = lambda n: (0, 0)            # replicated weights / biases / masks

    out_flat = pl.pallas_call(
        kernel,
        out_shape=jax.ShapeDtypeStruct((N, Cout, HW), x_nchw.dtype),
        grid_spec=pltpu.PrefetchScalarGridSpec(
            num_scalar_prefetch=0,
            grid=(N,),
            in_specs=[
                pl.BlockSpec((1, Cin, HW), lambda n: (n, 0, 0)),
                pl.BlockSpec((1, Cin, HW), lambda n: (n, 0, 0)),
                pl.BlockSpec(wmask.shape, rep),
                pl.BlockSpec(params["w1m"].shape, rep),
                pl.BlockSpec(params["w2m"].shape, rep),
                pl.BlockSpec(params["b2"].shape, rep),
                pl.BlockSpec(params["w3m"].shape, rep),
                pl.BlockSpec(params["b3"].shape, rep),
            ],
            out_specs=pl.BlockSpec((1, Cout, HW), lambda n: (n, 0, 0)),
        ),
        compiler_params=pltpu.CompilerParams(
            dimension_semantics=("parallel",)),   # v7x: batch across both TCs
    )(xf, yf, wmask, params["w1m"], params["w2m"], params["b2"],
      params["w3m"], params["b3"])

    return out_flat.reshape(N, Cout, H, W)


# ----------------------------------------------------------------------------
# Parameter construction (deterministic, synthetic) with BN folding.
# ----------------------------------------------------------------------------
_BN_EPS = 1e-5


def _fold_bn(gamma, beta, mean, var):
    scale = gamma / jnp.sqrt(var + _BN_EPS)
    return scale, beta - mean * scale


def _conv_matrix(w_oihw, scale=None):
    """PyTorch OIHW 3x3 weight (optionally BN-scale folded) -> (O, 9*I) bf16
    whose column order matches the kernel's im2col rows (t = kh*3+kw, then
    input channel)."""
    if scale is not None:
        w_oihw = w_oihw * scale[:, None, None, None]
    O, I, KH, KW = w_oihw.shape
    wm = jnp.transpose(w_oihw, (2, 3, 1, 0)).reshape(KH * KW * I, O).T
    return wm.astype(jnp.bfloat16)


def make_params(inc, outc, key):
    """Returns (raw, packed).  raw: f32 PyTorch-layout weights + eval-BN
    scale/bias (for the reference).  packed: kernel-ready bf16 matrices."""
    ks = jax.random.split(key, 5)

    def conv_w(k, cout, cin):
        return 0.1 * jax.random.normal(k, (cout, cin, 3, 3), jnp.float32)

    def bn(k, c):
        kg, kb, km, kv = jax.random.split(k, 4)
        gamma = 1.0 + 0.1 * jax.random.normal(kg, (c,), jnp.float32)
        beta = 0.1 * jax.random.normal(kb, (c,), jnp.float32)
        mean = 0.1 * jax.random.normal(km, (c,), jnp.float32)
        var = jnp.abs(jax.random.normal(kv, (c,), jnp.float32)) + 0.5
        return _fold_bn(gamma, beta, mean, var)

    w1 = conv_w(ks[0], outc, inc)          # conv1: bn=False, dp=False
    w2 = conv_w(ks[1], outc, outc)         # conv2: bn=True,  dp=False
    s2, b2 = bn(ks[2], outc)
    w3 = conv_w(ks[3], outc, 2 * outc)     # out:   bn=True,  dp=True (eval id)
    s3, b3 = bn(ks[4], outc)

    raw = dict(w1=w1, w2=w2, s2=s2, b2=b2, w3=w3, s3=s3, b3=b3)
    packed = {
        "w1m": _conv_matrix(w1),
        "w2m": _conv_matrix(w2, s2),
        "b2": b2.reshape(outc, 1),
        "w3m": jnp.concatenate(
            [_conv_matrix(w3[:, :outc], s3), _conv_matrix(w3[:, outc:], s3)],
            axis=1),
        "b3": b3.reshape(outc, 1),
    }
    return raw, packed


# ----------------------------------------------------------------------------
# Pure-JAX reference (eval-mode semantics of the PyTorch module).
# ----------------------------------------------------------------------------
def _ref_conv(x, w):
    return jax.lax.conv_general_dilated(
        x, w, window_strides=(1, 1), padding=((1, 1), (1, 1)),
        dimension_numbers=("NCHW", "OIHW", "NCHW"),
        precision=jax.lax.Precision.HIGHEST)


def _ref_lrelu(v, ns=0.2):
    return jnp.where(v >= 0, v, ns * v)


def iniconv_reference(x, y, raw):
    def cbn(t, w, s=None, b=None):
        t = _ref_conv(t, w)
        if s is not None:
            t = t * s[None, :, None, None] + b[None, :, None, None]
        return _ref_lrelu(t)

    hx = cbn(cbn(x, raw["w1"]), raw["w2"], raw["s2"], raw["b2"])
    hy = cbn(cbn(y, raw["w1"]), raw["w2"], raw["s2"], raw["b2"])
    z = jnp.concatenate([hx, hy], axis=1)
    return cbn(z, raw["w3"], raw["s3"], raw["b3"])


if __name__ == "__main__":
    key = jax.random.PRNGKey(0)
    kx, ky, kp = jax.random.split(key, 3)

    N, INC, OUTC, H, W = 2, 4, 8, 16, 16
    x = jax.random.normal(kx, (N, INC, H, W), jnp.float32)   # NCHW, like torch
    y = jax.random.normal(ky, (N, INC, H, W), jnp.float32)

    raw, packed = make_params(INC, OUTC, kp)

    out = iniconv_forward(x, y, packed)
    jax.block_until_ready(out)
    assert out.shape == (N, OUTC, H, W), out.shape

    # Loose check vs an f32 reference (bf16 MXU operands => small drift).
    ref = iniconv_reference(x, y, raw)
    err = float(jnp.max(jnp.abs(out - ref)))
    assert err < 1e-1, f"max |kernel - reference| too large: {err}"
    print("KERNEL_OK")
</pallas_src>

<mosaic_0001>
module attributes {stable_mosaic.version = 11 : i64} {
  func.func @_iniconv_kernel(%arg0: i32, %arg1: memref<1x4x256xf32, #tpu.memory_space<vmem>>, %arg2: memref<1x4x256xf32, #tpu.memory_space<vmem>>, %arg3: memref<2x256xf32, #tpu.memory_space<vmem>>, %arg4: memref<8x36xbf16, #tpu.memory_space<vmem>>, %arg5: memref<8x72xbf16, #tpu.memory_space<vmem>>, %arg6: memref<8x1xf32, #tpu.memory_space<vmem>>, %arg7: memref<8x144xbf16, #tpu.memory_space<vmem>>, %arg8: memref<8x1xf32, #tpu.memory_space<vmem>>, %arg9: memref<1x8x256xf32, #tpu.memory_space<vmem>>) attributes {dimension_semantics = [#tpu.dimension_semantics<parallel>], iteration_bounds = array<i64: 2>, scalar_prefetch = 0 : i64, scratch_operands = 0 : i64, tpu.core_type = #tpu.core_type<tc>, window_params = [{transform_indices = @transform_0, window_bounds = array<i64: 1, 4, 256>}, {transform_indices = @transform_1, window_bounds = array<i64: 1, 4, 256>}, {pipeline_mode = #tpu.pipeline_mode<synchronous>, transform_indices = @transform_2, window_bounds = array<i64: 2, 256>}, {pipeline_mode = #tpu.pipeline_mode<synchronous>, transform_indices = @transform_3, window_bounds = array<i64: 8, 36>}, {pipeline_mode = #tpu.pipeline_mode<synchronous>, transform_indices = @transform_4, window_bounds = array<i64: 8, 72>}, {pipeline_mode = #tpu.pipeline_mode<synchronous>, transform_indices = @transform_5, window_bounds = array<i64: 8, 1>}, {pipeline_mode = #tpu.pipeline_mode<synchronous>, transform_indices = @transform_6, window_bounds = array<i64: 8, 144>}, {pipeline_mode = #tpu.pipeline_mode<synchronous>, transform_indices = @transform_7, window_bounds = array<i64: 8, 1>}, {transform_indices = @transform_8, window_bounds = array<i64: 1, 8, 256>}]} {
    %c0 = arith.constant 0 : index
    %c0_0 = arith.constant 0 : index
    %0 = vector.load %arg3[%c0, %c0_0] : memref<2x256xf32, #tpu.memory_space<vmem>>, vector<2x256xf32>
    %1 = vector.extract_strided_slice %0 {offsets = [0, 0], sizes = [1, 256], strides = [1, 1]} : vector<2x256xf32> to vector<1x256xf32>
    %2 = vector.extract_strided_slice %0 {offsets = [1, 0], sizes = [1, 256], strides = [1, 1]} : vector<2x256xf32> to vector<1x256xf32>
    %c0_1 = arith.constant 0 : index
    %c0_2 = arith.constant 0 : index
    %3 = vector.load %arg4[%c0_1, %c0_2] : memref<8x36xbf16, #tpu.memory_space<vmem>>, vector<8x36xbf16>
    %c0_3 = arith.constant 0 : index
    %c0_4 = arith.constant 0 : index
    %4 = vector.load %arg5[%c0_3, %c0_4] : memref<8x72xbf16, #tpu.memory_space<vmem>>, vector<8x72xbf16>
    %c0_5 = arith.constant 0 : index
    %c0_6 = arith.constant 0 : index
    %5 = vector.load %arg7[%c0_5, %c0_6] : memref<8x144xbf16, #tpu.memory_space<vmem>>, vector<8x144xbf16>
    %c0_7 = arith.constant 0 : index
    %c0_8 = arith.constant 0 : index
    %6 = vector.load %arg6[%c0_7, %c0_8] : memref<8x1xf32, #tpu.memory_space<vmem>>, vector<8x1xf32>
    %c0_9 = arith.constant 0 : index
    %c0_10 = arith.constant 0 : index
    %7 = vector.load %arg8[%c0_9, %c0_10] : memref<8x1xf32, #tpu.memory_space<vmem>>, vector<8x1xf32>
    %c0_11 = arith.constant 0 : index
    %c0_12 = arith.constant 0 : index
    %c0_13 = arith.constant 0 : index
    %8 = vector.load %arg1[%c0_11, %c0_12, %c0_13] : memref<1x4x256xf32, #tpu.memory_space<vmem>>, vector<1x4x256xf32>
    %9 = vector.shape_cast %8 : vector<1x4x256xf32> to vector<4x256xf32>
    %cst = arith.constant 0.000000e+00 : f32
    %10 = vector.broadcast %cst : f32 to vector<4x17xf32>
    %11 = tpu.concatenate %10, %9, %10 in 1 : vector<4x17xf32>, vector<4x256xf32>, vector<4x17xf32> -> vector<4x290xf32>
    %12 = vector.extract_strided_slice %11 {offsets = [0, 0], sizes = [4, 256], strides = [1, 1]} : vector<4x290xf32> to vector<4x256xf32>
    %13 = vector.broadcast %1 : vector<1x256xf32> to vector<4x256xf32>
    %14 = arith.mulf %12, %13 : vector<4x256xf32>
    %15 = vector.extract_strided_slice %11 {offsets = [0, 1], sizes = [4, 256], strides = [1, 1]} : vector<4x290xf32> to vector<4x256xf32>
    %16 = vector.extract_strided_slice %11 {offsets = [0, 2], sizes = [4, 256], strides = [1, 1]} : vector<4x290xf32> to vector<4x256xf32>
    %17 = vector.broadcast %2 : vector<1x256xf32> to vector<4x256xf32>
    %18 = arith.mulf %16, %17 : vector<4x256xf32>
    %19 = vector.extract_strided_slice %11 {offsets = [0, 16], sizes = [4, 256], strides = [1, 1]} : vector<4x290xf32> to vector<4x256xf32>
    %20 = vector.broadcast %1 : vector<1x256xf32> to vector<4x256xf32>
    %21 = arith.mulf %19, %20 : vector<4x256xf32>
    %22 = vector.extract_strided_slice %11 {offsets = [0, 17], sizes = [4, 256], strides = [1, 1]} : vector<4x290xf32> to vector<4x256xf32>
    %23 = vector.extract_strided_slice %11 {offsets = [0, 18], sizes = [4, 256], strides = [1, 1]} : vector<4x290xf32> to vector<4x256xf32>
    %24 = vector.broadcast %2 : vector<1x256xf32> to vector<4x256xf32>
    %25 = arith.mulf %23, %24 : vector<4x256xf32>
    %26 = vector.extract_strided_slice %11 {offsets = [0, 32], sizes = [4, 256], strides = [1, 1]} : vector<4x290xf32> to vector<4x256xf32>
    %27 = vector.broadcast %1 : vector<1x256xf32> to vector<4x256xf32>
    %28 = arith.mulf %26, %27 : vector<4x256xf32>
    %29 = vector.extract_strided_slice %11 {offsets = [0, 33], sizes = [4, 256], strides = [1, 1]} : vector<4x290xf32> to vector<4x256xf32>
    %30 = vector.extract_strided_slice %11 {offsets = [0, 34], sizes = [4, 256], strides = [1, 1]} : vector<4x290xf32> to vector<4x256xf32>
    %31 = vector.broadcast %2 : vector<1x256xf32> to vector<4x256xf32>
    %32 = arith.mulf %30, %31 : vector<4x256xf32>
    %33 = tpu.concatenate %14, %15, %18, %21, %22, %25, %28, %29, %32 in 0 : vector<4x256xf32>, vector<4x256xf32>, vector<4x256xf32>, vector<4x256xf32>, vector<4x256xf32>, vector<4x256xf32>, vector<4x256xf32>, vector<4x256xf32>, vector<4x256xf32> -> vector<36x256xf32>
    %34 = arith.truncf %33 : vector<36x256xf32> to vector<36x256xbf16>
    %cst_14 = arith.constant dense<0.000000e+00> : vector<8x256xf32>
    %35 = tpu.matmul %3, %34, %cst_14 {dimension_numbers = #tpu.dot_dimension_numbers<[1], [0], [0], [1], [0, 0, 1, 1], [], []>} : vector<8x36xbf16>, vector<36x256xbf16>, vector<8x256xf32> -> vector<8x256xf32>
    %cst_15 = arith.constant 0.000000e+00 : f32
    %36 = vector.broadcast %cst_15 : f32 to vector<8x256xf32>
    %37 = arith.cmpf oge, %35, %36 : vector<8x256xf32>
    %cst_16 = arith.constant 2.000000e-01 : f32
    %38 = vector.broadcast %cst_16 : f32 to vector<8x256xf32>
    %39 = arith.mulf %38, %35 : vector<8x256xf32>
    %40 = arith.select %37, %35, %39 : vector<8x256xi1>, vector<8x256xf32>
    %cst_17 = arith.constant 0.000000e+00 : f32
    %41 = vector.broadcast %cst_17 : f32 to vector<8x17xf32>
    %42 = tpu.concatenate %41, %40, %41 in 1 : vector<8x17xf32>, vector<8x256xf32>, vector<8x17xf32> -> vector<8x290xf32>
    %43 = vector.extract_strided_slice %42 {offsets = [0, 0], sizes = [8, 256], strides = [1, 1]} : vector<8x290xf32> to vector<8x256xf32>
    %44 = vector.broadcast %1 : vector<1x256xf32> to vector<8x256xf32>
    %45 = arith.mulf %43, %44 : vector<8x256xf32>
    %46 = vector.extract_strided_slice %42 {offsets = [0, 1], sizes = [8, 256], strides = [1, 1]} : vector<8x290xf32> to vector<8x256xf32>
    %47 = vector.extract_strided_slice %42 {offsets = [0, 2], sizes = [8, 256], strides = [1, 1]} : vector<8x290xf32> to vector<8x256xf32>
    %48 = vector.broadcast %2 : vector<1x256xf32> to vector<8x256xf32>
    %49 = arith.mulf %47, %48 : vector<8x256xf32>
    %50 = vector.extract_strided_slice %42 {offsets = [0, 16], sizes = [8, 256], strides = [1, 1]} : vector<8x290xf32> to vector<8x256xf32>
    %51 = vector.broadcast %1 : vector<1x256xf32> to vector<8x256xf32>
    %52 = arith.mulf %50, %51 : vector<8x256xf32>
    %53 = vector.extract_strided_slice %42 {offsets = [0, 17], sizes = [8, 256], strides = [1, 1]} : vector<8x290xf32> to vector<8x256xf32>
    %54 = vector.extract_strided_slice %42 {offsets = [0, 18], sizes = [8, 256], strides = [1, 1]} : vector<8x290xf32> to vector<8x256xf32>
    %55 = vector.broadcast %2 : vector<1x256xf32> to vector<8x256xf32>
    %56 = arith.mulf %54, %55 : vector<8x256xf32>
    %57 = vector.extract_strided_slice %42 {offsets = [0, 32], sizes = [8, 256], strides = [1, 1]} : vector<8x290xf32> to vector<8x256xf32>
    %58 = vector.broadcast %1 : vector<1x256xf32> to vector<8x256xf32>
    %59 = arith.mulf %57, %58 : vector<8x256xf32>
    %60 = vector.extract_strided_slice %42 {offsets = [0, 33], sizes = [8, 256], strides = [1, 1]} : vector<8x290xf32> to vector<8x256xf32>
    %61 = vector.extract_strided_slice %42 {offsets = [0, 34], sizes = [8, 256], strides = [1, 1]} : vector<8x290xf32> to vector<8x256xf32>
    %62 = vector.broadcast %2 : vector<1x256xf32> to vector<8x256xf32>
    %63 = arith.mulf %61, %62 : vector<8x256xf32>
    %64 = tpu.concatenate %45, %46, %49, %52, %53, %56, %59, %60, %63 in 0 : vector<8x256xf32>, vector<8x256xf32>, vector<8x256xf32>, vector<8x256xf32>, vector<8x256xf32>, vector<8x256xf32>, vector<8x256xf32>, vector<8x256xf32>, vector<8x256xf32> -> vector<72x256xf32>
    %65 = arith.truncf %64 : vector<72x256xf32> to vector<72x256xbf16>
    %cst_18 = arith.constant dense<0.000000e+00> : vector<8x256xf32>
    %66 = tpu.matmul %4, %65, %cst_18 {dimension_numbers = #tpu.dot_dimension_numbers<[1], [0], [0], [1], [0, 0, 1, 1], [], []>} : vector<8x72xbf16>, vector<72x256xbf16>, vector<8x256xf32> -> vector<8x256xf32>
    %67 = vector.broadcast %6 : vector<8x1xf32> to vector<8x256xf32>
    %68 = arith.addf %66, %67 : vector<8x256xf32>
    %cst_19 = arith.constant 0.000000e+00 : f32
    %69 = vector.broadcast %cst_19 : f32 to vector<8x256xf32>
    %70 = arith.cmpf oge, %68, %69 : vector<8x256xf32>
    %cst_20 = arith.constant 2.000000e-01 : f32
    %71 = vector.broadcast %cst_20 : f32 to vector<8x256xf32>
    %72 = arith.mulf %71, %68 : vector<8x256xf32>
    %73 = arith.select %70, %68, %72 : vector<8x256xi1>, vector<8x256xf32>
    %cst_21 = arith.constant 0.000000e+00 : f32
    %74 = vector.broadcast %cst_21 : f32 to vector<8x17xf32>
    %75 = tpu.concatenate %74, %73, %74 in 1 : vector<8x17xf32>, vector<8x256xf32>, vector<8x17xf32> -> vector<8x290xf32>
    %76 = vector.extract_strided_slice %75 {offsets = [0, 0], sizes = [8, 256], strides = [1, 1]} : vector<8x290xf32> to vector<8x256xf32>
    %77 = vector.broadcast %1 : vector<1x256xf32> to vector<8x256xf32>
    %78 = arith.mulf %76, %77 : vector<8x256xf32>
    %79 = vector.extract_strided_slice %75 {offsets = [0, 1], sizes = [8, 256], strides = [1, 1]} : vector<8x290xf32> to vector<8x256xf32>
    %80 = vector.extract_strided_slice %75 {offsets = [0, 2], sizes = [8, 256], strides = [1, 1]} : vector<8x290xf32> to vector<8x256xf32>
    %81 = vector.broadcast %2 : vector<1x256xf32> to vector<8x256xf32>
    %82 = arith.mulf %80, %81 : vector<8x256xf32>
    %83 = vector.extract_strided_slice %75 {offsets = [0, 16], sizes = [8, 256], strides = [1, 1]} : vector<8x290xf32> to vector<8x256xf32>
    %84 = vector.broadcast %1 : vector<1x256xf32> to vector<8x256xf32>
    %85 = arith.mulf %83, %84 : vector<8x256xf32>
    %86 = vector.extract_strided_slice %75 {offsets = [0, 17], sizes = [8, 256], strides = [1, 1]} : vector<8x290xf32> to vector<8x256xf32>
    %87 = vector.extract_strided_slice %75 {offsets = [0, 18], sizes = [8, 256], strides = [1, 1]} : vector<8x290xf32> to vector<8x256xf32>
    %88 = vector.broadcast %2 : vector<1x256xf32> to vector<8x256xf32>
    %89 = arith.mulf %87, %88 : vector<8x256xf32>
    %90 = vector.extract_strided_slice %75 {offsets = [0, 32], sizes = [8, 256], strides = [1, 1]} : vector<8x290xf32> to vector<8x256xf32>
    %91 = vector.broadcast %1 : vector<1x256xf32> to vector<8x256xf32>
    %92 = arith.mulf %90, %91 : vector<8x256xf32>
    %93 = vector.extract_strided_slice %75 {offsets = [0, 33], sizes = [8, 256], strides = [1, 1]} : vector<8x290xf32> to vector<8x256xf32>
    %94 = vector.extract_strided_slice %75 {offsets = [0, 34], sizes = [8, 256], strides = [1, 1]} : vector<8x290xf32> to vector<8x256xf32>
    %95 = vector.broadcast %2 : vector<1x256xf32> to vector<8x256xf32>
    %96 = arith.mulf %94, %95 : vector<8x256xf32>
    %97 = tpu.concatenate %78, %79, %82, %85, %86, %89, %92, %93, %96 in 0 : vector<8x256xf32>, vector<8x256xf32>, vector<8x256xf32>, vector<8x256xf32>, vector<8x256xf32>, vector<8x256xf32>, vector<8x256xf32>, vector<8x256xf32>, vector<8x256xf32> -> vector<72x256xf32>
    %c0_22 = arith.constant 0 : index
    %c0_23 = arith.constant 0 : index
    %c0_24 = arith.constant 0 : index
    %98 = vector.load %arg2[%c0_22, %c0_23, %c0_24] : memref<1x4x256xf32, #tpu.memory_space<vmem>>, vector<1x4x256xf32>
    %99 = vector.shape_cast %98 : vector<1x4x256xf32> to vector<4x256xf32>
    %cst_25 = arith.constant 0.000000e+00 : f32
    %100 = vector.broadcast %cst_25 : f32 to vector<4x17xf32>
    %101 = tpu.concatenate %100, %99, %100 in 1 : vector<4x17xf32>, vector<4x256xf32>, vector<4x17xf32> -> vector<4x290xf32>
    %102 = vector.extract_strided_slice %101 {offsets = [0, 0], sizes = [4, 256], strides = [1, 1]} : vector<4x290xf32> to vector<4x256xf32>
    %103 = vector.broadcast %1 : vector<1x256xf32> to vector<4x256xf32>
    %104 = arith.mulf %102, %103 : vector<4x256xf32>
    %105 = vector.extract_strided_slice %101 {offsets = [0, 1], sizes = [4, 256], strides = [1, 1]} : vector<4x290xf32> to vector<4x256xf32>
    %106 = vector.extract_strided_slice %101 {offsets = [0, 2], sizes = [4, 256], strides = [1, 1]} : vector<4x290xf32> to vector<4x256xf32>
    %107 = vector.broadcast %2 : vector<1x256xf32> to vector<4x256xf32>
    %108 = arith.mulf %106, %107 : vector<4x256xf32>
    %109 = vector.extract_strided_slice %101 {offsets = [0, 16], sizes = [4, 256], strides = [1, 1]} : vector<4x290xf32> to vector<4x256xf32>
    %110 = vector.broadcast %1 : vector<1x256xf32> to vector<4x256xf32>
    %111 = arith.mulf %109, %110 : vector<4x256xf32>
    %112 = vector.extract_strided_slice %101 {offsets = [0, 17], sizes = [4, 256], strides = [1, 1]} : vector<4x290xf32> to vector<4x256xf32>
    %113 = vector.extract_strided_slice %101 {offsets = [0, 18], sizes = [4, 256], strides = [1, 1]} : vector<4x290xf32> to vector<4x256xf32>
    %114 = vector.broadcast %2 : vector<1x256xf32> to vector<4x256xf32>
    %115 = arith.mulf %113, %114 : vector<4x256xf32>
    %116 = vector.extract_strided_slice %101 {offsets = [0, 32], sizes = [4, 256], strides = [1, 1]} : vector<4x290xf32> to vector<4x256xf32>
    %117 = vector.broadcast %1 : vector<1x256xf32> to vector<4x256xf32>
    %118 = arith.mulf %116, %117 : vector<4x256xf32>
    %119 = vector.extract_strided_slice %101 {offsets = [0, 33], sizes = [4, 256], strides = [1, 1]} : vector<4x290xf32> to vector<4x256xf32>
    %120 = vector.extract_strided_slice %101 {offsets = [0, 34], sizes = [4, 256], strides = [1, 1]} : vector<4x290xf32> to vector<4x256xf32>
    %121 = vector.broadcast %2 : vector<1x256xf32> to vector<4x256xf32>
    %122 = arith.mulf %120, %121 : vector<4x256xf32>
    %123 = tpu.concatenate %104, %105, %108, %111, %112, %115, %118, %119, %122 in 0 : vector<4x256xf32>, vector<4x256xf32>, vector<4x256xf32>, vector<4x256xf32>, vector<4x256xf32>, vector<4x256xf32>, vector<4x256xf32>, vector<4x256xf32>, vector<4x256xf32> -> vector<36x256xf32>
    %124 = arith.truncf %123 : vector<36x256xf32> to vector<36x256xbf16>
    %cst_26 = arith.constant dense<0.000000e+00> : vector<8x256xf32>
    %125 = tpu.matmul %3, %124, %cst_26 {dimension_numbers = #tpu.dot_dimension_numbers<[1], [0], [0], [1], [0, 0, 1, 1], [], []>} : vector<8x36xbf16>, vector<36x256xbf16>, vector<8x256xf32> -> vector<8x256xf32>
    %cst_27 = arith.constant 0.000000e+00 : f32
    %126 = vector.broadcast %cst_27 : f32 to vector<8x256xf32>
    %127 = arith.cmpf oge, %125, %126 : vector<8x256xf32>
    %cst_28 = arith.constant 2.000000e-01 : f32
    %128 = vector.broadcast %cst_28 : f32 to vector<8x256xf32>
    %129 = arith.mulf %128, %125 : vector<8x256xf32>
    %130 = arith.select %127, %125, %129 : vector<8x256xi1>, vector<8x256xf32>
    %cst_29 = arith.constant 0.000000e+00 : f32
    %131 = vector.broadcast %cst_29 : f32 to vector<8x17xf32>
    %132 = tpu.concatenate %131, %130, %131 in 1 : vector<8x17xf32>, vector<8x256xf32>, vector<8x17xf32> -> vector<8x290xf32>
    %133 = vector.extract_strided_slice %132 {offsets = [0, 0], sizes = [8, 256], strides = [1, 1]} : vector<8x290xf32> to vector<8x256xf32>
    %134 = vector.broadcast %1 : vector<1x256xf32> to vector<8x256xf32>
    %135 = arith.mulf %133, %134 : vector<8x256xf32>
    %136 = vector.extract_strided_slice %132 {offsets = [0, 1], sizes = [8, 256], strides = [1, 1]} : vector<8x290xf32> to vector<8x256xf32>
    %137 = vector.extract_strided_slice %132 {offsets = [0, 2], sizes = [8, 256], strides = [1, 1]} : vector<8x290xf32> to vector<8x256xf32>
    %138 = vector.broadcast %2 : vector<1x256xf32> to vector<8x256xf32>
    %139 = arith.mulf %137, %138 : vector<8x256xf32>
    %140 = vector.extract_strided_slice %132 {offsets = [0, 16], sizes = [8, 256], strides = [1, 1]} : vector<8x290xf32> to vector<8x256xf32>
    %141 = vector.broadcast %1 : vector<1x256xf32> to vector<8x256xf32>
    %142 = arith.mulf %140, %141 : vector<8x256xf32>
    %143 = vector.extract_strided_slice %132 {offsets = [0, 17], sizes = [8, 256], strides = [1, 1]} : vector<8x290xf32> to vector<8x256xf32>
    %144 = vector.extract_strided_slice %132 {offsets = [0, 18], sizes = [8, 256], strides = [1, 1]} : vector<8x290xf32> to vector<8x256xf32>
    %145 = vector.broadcast %2 : vector<1x256xf32> to vector<8x256xf32>
    %146 = arith.mulf %144, %145 : vector<8x256xf32>
    %147 = vector.extract_strided_slice %132 {offsets = [0, 32], sizes = [8, 256], strides = [1, 1]} : vector<8x290xf32> to vector<8x256xf32>
    %148 = vector.broadcast %1 : vector<1x256xf32> to vector<8x256xf32>
    %149 = arith.mulf %147, %148 : vector<8x256xf32>
    %150 = vector.extract_strided_slice %132 {offsets = [0, 33], sizes = [8, 256], strides = [1, 1]} : vector<8x290xf32> to vector<8x256xf32>
    %151 = vector.extract_strided_slice %132 {offsets = [0, 34], sizes = [8, 256], strides = [1, 1]} : vector<8x290xf32> to vector<8x256xf32>
    %152 = vector.broadcast %2 : vector<1x256xf32> to vector<8x256xf32>
    %153 = arith.mulf %151, %152 : vector<8x256xf32>
    %154 = tpu.concatenate %135, %136, %139, %142, %143, %146, %149, %150, %153 in 0 : vector<8x256xf32>, vector<8x256xf32>, vector<8x256xf32>, vector<8x256xf32>, vector<8x256xf32>, vector<8x256xf32>, vector<8x256xf32>, vector<8x256xf32>, vector<8x256xf32> -> vector<72x256xf32>
    %155 = arith.truncf %154 : vector<72x256xf32> to vector<72x256xbf16>
    %cst_30 = arith.constant dense<0.000000e+00> : vector<8x256xf32>
    %156 = tpu.matmul %4, %155, %cst_30 {dimension_numbers = #tpu.dot_dimension_numbers<[1], [0], [0], [1], [0, 0, 1, 1], [], []>} : vector<8x72xbf16>, vector<72x256xbf16>, vector<8x256xf32> -> vector<8x256xf32>
    %157 = vector.broadcast %6 : vector<8x1xf32> to vector<8x256xf32>
    %158 = arith.addf %156, %157 : vector<8x256xf32>
    %cst_31 = arith.constant 0.000000e+00 : f32
    %159 = vector.broadcast %cst_31 : f32 to vector<8x256xf32>
    %160 = arith.cmpf oge, %158, %159 : vector<8x256xf32>
    %cst_32 = arith.constant 2.000000e-01 : f32
    %161 = vector.broadcast %cst_32 : f32 to vector<8x256xf32>
    %162 = arith.mulf %161, %158 : vector<8x256xf32>
    %163 = arith.select %160, %158, %162 : vector<8x256xi1>, vector<8x256xf32>
    %cst_33 = arith.constant 0.000000e+00 : f32
    %164 = vector.broadcast %cst_33 : f32 to vector<8x17xf32>
    %165 = tpu.concatenate %164, %163, %164 in 1 : vector<8x17xf32>, vector<8x256xf32>, vector<8x17xf32> -> vector<8x290xf32>
    %166 = vector.extract_strided_slice %165 {offsets = [0, 0], sizes = [8, 256], strides = [1, 1]} : vector<8x290xf32> to vector<8x256xf32>
    %167 = vector.broadcast %1 : vector<1x256xf32> to vector<8x256xf32>
    %168 = arith.mulf %166, %167 : vector<8x256xf32>
    %169 = vector.extract_strided_slice %165 {offsets = [0, 1], sizes = [8, 256], strides = [1, 1]} : vector<8x290xf32> to vector<8x256xf32>
    %170 = vector.extract_strided_slice %165 {offsets = [0, 2], sizes = [8, 256], strides = [1, 1]} : vector<8x290xf32> to vector<8x256xf32>
    %171 = vector.broadcast %2 : vector<1x256xf32> to vector<8x256xf32>
    %172 = arith.mulf %170, %171 : vector<8x256xf32>
    %173 = vector.extract_strided_slice %165 {offsets = [0, 16], sizes = [8, 256], strides = [1, 1]} : vector<8x290xf32> to vector<8x256xf32>
    %174 = vector.broadcast %1 : vector<1x256xf32> to vector<8x256xf32>
    %175 = arith.mulf %173, %174 : vector<8x256xf32>
    %176 = vector.extract_strided_slice %165 {offsets = [0, 17], sizes = [8, 256], strides = [1, 1]} : vector<8x290xf32> to vector<8x256xf32>
    %177 = vector.extract_strided_slice %165 {offsets = [0, 18], sizes = [8, 256], strides = [1, 1]} : vector<8x290xf32> to vector<8x256xf32>
    %178 = vector.broadcast %2 : vector<1x256xf32> to vector<8x256xf32>
    %179 = arith.mulf %177, %178 : vector<8x256xf32>
    %180 = vector.extract_strided_slice %165 {offsets = [0, 32], sizes = [8, 256], strides = [1, 1]} : vector<8x290xf32> to vector<8x256xf32>
    %181 = vector.broadcast %1 : vector<1x256xf32> to vector<8x256xf32>
    %182 = arith.mulf %180, %181 : vector<8x256xf32>
    %183 = vector.extract_strided_slice %165 {offsets = [0, 33], sizes = [8, 256], strides = [1, 1]} : vector<8x290xf32> to vector<8x256xf32>
    %184 = vector.extract_strided_slice %165 {offsets = [0, 34], sizes = [8, 256], strides = [1, 1]} : vector<8x290xf32> to vector<8x256xf32>
    %185 = vector.broadcast %2 : vector<1x256xf32> to vector<8x256xf32>
    %186 = arith.mulf %184, %185 : vector<8x256xf32>
    %187 = tpu.concatenate %168, %169, %172, %175, %176, %179, %182, %183, %186 in 0 : vector<8x256xf32>, vector<8x256xf32>, vector<8x256xf32>, vector<8x256xf32>, vector<8x256xf32>, vector<8x256xf32>, vector<8x256xf32>, vector<8x256xf32>, vector<8x256xf32> -> vector<72x256xf32>
    %188 = tpu.concatenate %97, %187 in 0 : vector<72x256xf32>, vector<72x256xf32> -> vector<144x256xf32>
    %189 = arith.truncf %188 : vector<144x256xf32> to vector<144x256xbf16>
    %cst_34 = arith.constant dense<0.000000e+00> : vector<8x256xf32>
    %190 = tpu.matmul %5, %189, %cst_34 {dimension_numbers = #tpu.dot_dimension_numbers<[1], [0], [0], [1], [0, 0, 1, 1], [], []>} : vector<8x144xbf16>, vector<144x256xbf16>, vector<8x256xf32> -> vector<8x256xf32>
    %191 = vector.broadcast %7 : vector<8x1xf32> to vector<8x256xf32>
    %192 = arith.addf %190, %191 : vector<8x256xf32>
    %cst_35 = arith.constant 0.000000e+00 : f32
    %193 = vector.broadcast %cst_35 : f32 to vector<8x256xf32>
    %194 = arith.cmpf oge, %192, %193 : vector<8x256xf32>
    %cst_36 = arith.constant 2.000000e-01 : f32
    %195 = vector.broadcast %cst_36 : f32 to vector<8x256xf32>
    %196 = arith.mulf %195, %192 : vector<8x256xf32>
    %197 = arith.select %194, %192, %196 : vector<8x256xi1>, vector<8x256xf32>
    %198 = vector.shape_cast %197 : vector<8x256xf32> to vector<1x8x256xf32>
    %c0_37 = arith.constant 0 : index
    %c0_38 = arith.constant 0 : index
    %c0_39 = arith.constant 0 : index
    %199 = vector.load %arg9[%c0_37, %c0_38, %c0_39] : memref<1x8x256xf32, #tpu.memory_space<vmem>>, vector<1x8x256xf32>
    tpu.vector_store %arg9[%c0_37, %c0_38, %c0_39], %198 {strides = array<i32>} : memref<1x8x256xf32, #tpu.memory_space<vmem>>, vector<1x8x256xf32>,
    return
  }
  func.func @transform_0(%arg0: i32) -> (i32, i32, i32) {
    %c0_i32 = arith.constant 0 : i32
    %c0_i32_0 = arith.constant 0 : i32
    %c0_i32_1 = arith.constant 0 : i32
    return %arg0, %c0_i32, %c0_i32_0 : i32, i32, i32
  }
  func.func @transform_1(%arg0: i32) -> (i32, i32, i32) {
    %c0_i32 = arith.constant 0 : i32
    %c0_i32_0 = arith.constant 0 : i32
    %c0_i32_1 = arith.constant 0 : i32
    return %arg0, %c0_i32, %c0_i32_0 : i32, i32, i32
  }
  func.func @transform_2(%arg0: i32) -> (i32, i32) {
    %c0_i32 = arith.constant 0 : i32
    %c0_i32_0 = arith.constant 0 : i32
    %c0_i32_1 = arith.constant 0 : i32
    return %c0_i32, %c0_i32_0 : i32, i32
  }
  func.func @transform_3(%arg0: i32) -> (i32, i32) {
    %c0_i32 = arith.constant 0 : i32
    %c0_i32_0 = arith.constant 0 : i32
    %c0_i32_1 = arith.constant 0 : i32
    return %c0_i32, %c0_i32_0 : i32, i32
  }
  func.func @transform_4(%arg0: i32) -> (i32, i32) {
    %c0_i32 = arith.constant 0 : i32
    %c0_i32_0 = arith.constant 0 : i32
    %c0_i32_1 = arith.constant 0 : i32
    return %c0_i32, %c0_i32_0 : i32, i32
  }
  func.func @transform_5(%arg0: i32) -> (i32, i32) {
    %c0_i32 = arith.constant 0 : i32
    %c0_i32_0 = arith.constant 0 : i32
    %c0_i32_1 = arith.constant 0 : i32
    return %c0_i32, %c0_i32_0 : i32, i32
  }
  func.func @transform_6(%arg0: i32) -> (i32, i32) {
    %c0_i32 = arith.constant 0 : i32
    %c0_i32_0 = arith.constant 0 : i32
    %c0_i32_1 = arith.constant 0 : i32
    return %c0_i32, %c0_i32_0 : i32, i32
  }
  func.func @transform_7(%arg0: i32) -> (i32, i32) {
    %c0_i32 = arith.constant 0 : i32
    %c0_i32_0 = arith.constant 0 : i32
    %c0_i32_1 = arith.constant 0 : i32
    return %c0_i32, %c0_i32_0 : i32, i32
  }
  func.func @transform_8(%arg0: i32) -> (i32, i32, i32) {
    %c0_i32 = arith.constant 0 : i32
    %c0_i32_0 = arith.constant 0 : i32
    %c0_i32_1 = arith.constant 0 : i32
    return %arg0, %c0_i32, %c0_i32_0 : i32, i32, i32
  }
}

</mosaic_0001>

<llo_original>
// kernel: tpu_custom_call.1
$region0: #{tpu_custom_call.1}
  #allocation0 [shape = 'u32[]', space=smem, size = 0x4, offset = 0x4, fixed_abs, tag = 'smem constant byte address 0x4 - core index']
  #allocation1 [shape = 'u32[72,128]{1,0:T(1,128)}', space=vmem, size = 0x9000, scoped, tag = 'internal scratch']
  %s0 = inlined_call_operand.vmem [shape: f32[2,4,256], index: 0, kind: input, shape index: {}]
  %s1 = inlined_call_operand.hbm [shape: f32[2,4,256], index: 1, kind: input, shape index: {}]
  %s2 = inlined_call_operand.hbm [shape: f32[2,256], index: 2, kind: input, shape index: {}]
  %s3 = inlined_call_operand.hbm [shape: bf16[8,36], index: 3, kind: input, shape index: {}]
  %s4 = inlined_call_operand.hbm [shape: bf16[8,72], index: 4, kind: input, shape index: {}]
  %s5 = inlined_call_operand.vmem [shape: f32[8,1], index: 5, kind: input, shape index: {}]
  %s6 = inlined_call_operand.hbm [shape: bf16[8,144], index: 6, kind: input, shape index: {}]
  %s7 = inlined_call_operand.vmem [shape: f32[8,1], index: 7, kind: input, shape index: {}]
  %s8 = inlined_call_operand.hbm [shape: f32[2,8,256], index: 8, kind: output, shape index: {}]
  %s9 = sld [smem:[#allocation0]]
  $region85: #{tpu_custom_call.1} parent=0
    _
  %s11 = ssub.s32 1, %s9
  %s12 = scalar_select 0, %s11, %s9
  $region1: #{tpu_custom_call.1} parent=0
    #allocation2 [shape = 'u8[8192]{0}', space=vmem, size = 0x2000, scoped, tag = 'input window, operand 1']
    #allocation3 [shape = 's32[2]{0}', space=sflag, size = 0x8, scoped, tag = 'scoped memory for tpu_custom_call.1']
    #allocation4 [shape = 's32[2]{0}', space=sflag, size = 0x8, scoped, tag = 'scoped memory for tpu_custom_call.1']
    #allocation5 [shape = 'u8[2048]{0}', space=vmem, size = 0x800, scoped, tag = 'input window, operand 2, single buffered']
    #allocation6 [shape = 's32[1]{0}', space=sflag, size = 0x4, scoped, tag = 'scoped memory for tpu_custom_call.1']
    #allocation7 [shape = 'u8[2048]{0}', space=vmem, size = 0x800, scoped, tag = 'input window, operand 3, single buffered']
    #allocation8 [shape = 'u8[2048]{0}', space=vmem, size = 0x800, scoped, tag = 'input window, operand 4, single buffered']
    #allocation9 [shape = 's32[1]{0}', space=sflag, size = 0x4, scoped, tag = 'scoped memory for tpu_custom_call.1']
    #allocation10 [shape = 'u8[4096]{0}', space=vmem, size = 0x1000, scoped, tag = 'input window, operand 6, single buffered']
    #allocation11 [shape = 'u8[16384]{0}', space=vmem, size = 0x4000, scoped, tag = 'output window, operand 0']
    %13 = vsyncpa [#allocation3], 0
    %s14 = scalar_lea.sflag [#allocation3], 1
    %15 = vsyncpa %s14, 0
    %16 = vsyncpa [#allocation6], 0
    %17 = vsyncpa [#allocation9], 0
    %18 = vsyncpa [#allocation4], 0
    %s19 = scalar_lea.sflag [#allocation4], 1
    %20 = vsyncpa %s19, 0
    loop: start=0, step=1, limit=4
    $region2: #{tpu_custom_call.1} parent=1 // loop_pre_header
      _
    $region3: #{tpu_custom_call.1} parent=1 // loop_header
      %s22 = sphi 0, %s26
      %p23 = scmp.ge.s32.totalorder %s22, 4
      %s32 = sphi 0, %s34
      %s35 = sphi 0, %s32
      %s36 = sphi 0, %s35
      %s52 = sphi 0, %s36
      %s58 = sphi 0, %s60
      %s61 = sphi 0, %s58
      %s62 = sphi 0, %s61
      %s78 = sphi 0, %s62
      %s82 = sphi 0, %s82
      %s84 = sphi 0, %s82
      %s85 = sphi 0, %s84
      %s99 = sphi 0, %s85
      %s103 = sphi 0, %s103
      %s105 = sphi 0, %s103
      %s106 = sphi 0, %s105
      %s120 = sphi 0, %s106
      %s124 = sphi 0, %s124
      %s126 = sphi 0, %s124
      %s127 = sphi 0, %s126
      %s141 = sphi 0, %s127
      %s145 = sphi 0, %s145
      %s147 = sphi 0, %s145
      %s148 = sphi 0, %s147
      %s162 = sphi 0, %s148
      %s166 = sphi 0, %s166
      %s168 = sphi 0, %s166
      %s169 = sphi 0, %s168
      %s183 = sphi 0, %s169
      %s187 = sphi 0, %s187
      %s189 = sphi 0, %s187
      %s190 = sphi 0, %s189
      %s204 = sphi 0, %s190
      %s210 = sphi 0, %s212
      %s213 = sphi 0, %s210
      %s214 = sphi 0, %s213
      %s230 = sphi 0, %s214
    $region4: #{tpu_custom_call.1} parent=1 // loop_header_branch
      %25 = sbr.rel (%p23) target = $region8
    $region5: #{tpu_custom_call.1} parent=1 // loop_body
      %s27 = ssub.s32 %s22, 1
      %s28 = ssub.s32 %s22, 2
      %s29 = sadd.s32 %s22, 1
      %s30 = ssub.s32 %s22, %s29
      %p31 = scmp.eq.s32.totalorder %s30, 0
      %s33 = sadd.s32 %s32, 1
      %s34 = scalar_select %p31, %s32, %s33
      %p37 = pneg %p31
      %p38 = scmp.eq.s32.totalorder %s22, 1
      %p39 = por %p37, %p38
      %p40 = scmp.ne.s32.totalorder %s32, %s35
      %p41 = scmp.eq.s32.totalorder %s22, 0
      %p42 = por %p40, %p41
      %p43 = scmp.ne.s32.totalorder %s32, %s35
      %p44 = scmp.eq.s32.totalorder %s27, 1
      %p45 = por %p43, %p44
      %p46 = scmp.ne.s32.totalorder %s35, %s36
      %p47 = scmp.eq.s32.totalorder %s27, 0
      %p48 = por %p46, %p47
      %p49 = scmp.ne.s32.totalorder %s35, %s36
      %p50 = scmp.eq.s32.totalorder %s28, 1
      %p51 = por %p49, %p50
      %p53 = scmp.ne.s32.totalorder %s36, %s52
      %p54 = scmp.eq.s32.totalorder %s28, 0
      %p55 = por %p53, %p54
      %s56 = ssub.s32 %s22, %s29
      %p57 = scmp.eq.s32.totalorder %s56, 0
      %s59 = sadd.s32 %s58, 1
      %s60 = scalar_select %p57, %s58, %s59
      %p63 = pneg %p57
      %p64 = scmp.eq.s32.totalorder %s22, 1
      %p65 = por %p63, %p64
      %p66 = scmp.ne.s32.totalorder %s58, %s61
      %p67 = scmp.eq.s32.totalorder %s22, 0
      %p68 = por %p66, %p67
      %p69 = scmp.ne.s32.totalorder %s58, %s61
      %p70 = scmp.eq.s32.totalorder %s27, 1
      %p71 = por %p69, %p70
      %p72 = scmp.ne.s32.totalorder %s61, %s62
      %p73 = scmp.eq.s32.totalorder %s27, 0
      %p74 = por %p72, %p73
      %p75 = scmp.ne.s32.totalorder %s61, %s62
      %p76 = scmp.eq.s32.totalorder %s28, 1
      %p77 = por %p75, %p76
      %p79 = scmp.ne.s32.totalorder %s62, %s78
      %p80 = scmp.eq.s32.totalorder %s28, 0
      %p81 = por %p79, %p80
      %s83 = sadd.s32 %s82, 1
      %p86 = scmp.eq.s32.totalorder %s22, 1
      %p87 = scmp.ne.s32.totalorder %s82, %s84
      %p88 = scmp.eq.s32.totalorder %s22, 0
      %p89 = por %p87, %p88
      %p90 = scmp.ne.s32.totalorder %s82, %s84
      %p91 = scmp.eq.s32.totalorder %s27, 1
      %p92 = por %p90, %p91
      %p93 = scmp.ne.s32.totalorder %s84, %s85
      %p94 = scmp.eq.s32.totalorder %s27, 0
      %p95 = por %p93, %p94
      %p96 = scmp.ne.s32.totalorder %s84, %s85
      %p97 = scmp.eq.s32.totalorder %s28, 1
      %p98 = por %p96, %p97
      %p100 = scmp.ne.s32.totalorder %s85, %s99
      %p101 = scmp.eq.s32.totalorder %s28, 0
      %p102 = por %p100, %p101
      %s104 = sadd.s32 %s103, 1
      %p107 = scmp.eq.s32.totalorder %s22, 1
      %p108 = scmp.ne.s32.totalorder %s103, %s105
      %p109 = scmp.eq.s32.totalorder %s22, 0
      %p110 = por %p108, %p109
      %p111 = scmp.ne.s32.totalorder %s103, %s105
      %p112 = scmp.eq.s32.totalorder %s27, 1
      %p113 = por %p111, %p112
      %p114 = scmp.ne.s32.totalorder %s105, %s106
      %p115 = scmp.eq.s32.totalorder %s27, 0
      %p116 = por %p114, %p115
      %p117 = scmp.ne.s32.totalorder %s105, %s106
      %p118 = scmp.eq.s32.totalorder %s28, 1
      %p119 = por %p117, %p118
      %p121 = scmp.ne.s32.totalorder %s106, %s120
      %p122 = scmp.eq.s32.totalorder %s28, 0
      %p123 = por %p121, %p122
      %s125 = sadd.s32 %s124, 1
      %p128 = scmp.eq.s32.totalorder %s22, 1
      %p129 = scmp.ne.s32.totalorder %s124, %s126
      %p130 = scmp.eq.s32.totalorder %s22, 0
      %p131 = por %p129, %p130
      %p132 = scmp.ne.s32.totalorder %s124, %s126
      %p133 = scmp.eq.s32.totalorder %s27, 1
      %p134 = por %p132, %p133
      %p135 = scmp.ne.s32.totalorder %s126, %s127
      %p136 = scmp.eq.s32.totalorder %s27, 0
      %p137 = por %p135, %p136
      %p138 = scmp.ne.s32.totalorder %s126, %s127
      %p139 = scmp.eq.s32.totalorder %s28, 1
      %p140 = por %p138, %p139
      %p142 = scmp.ne.s32.totalorder %s127, %s141
      %p143 = scmp.eq.s32.totalorder %s28, 0
      %p144 = por %p142, %p143
      %s146 = sadd.s32 %s145, 1
      %p149 = scmp.eq.s32.totalorder %s22, 1
      %p150 = scmp.ne.s32.totalorder %s145, %s147
      %p151 = scmp.eq.s32.totalorder %s22, 0
      %p152 = por %p150, %p151
      %p153 = scmp.ne.s32.totalorder %s145, %s147
      %p154 = scmp.eq.s32.totalorder %s27, 1
      %p155 = por %p153, %p154
      %p156 = scmp.ne.s32.totalorder %s147, %s148
      %p157 = scmp.eq.s32.totalorder %s27, 0
      %p158 = por %p156, %p157
      %p159 = scmp.ne.s32.totalorder %s147, %s148
      %p160 = scmp.eq.s32.totalorder %s28, 1
      %p161 = por %p159, %p160
      %p163 = scmp.ne.s32.totalorder %s148, %s162
      %p164 = scmp.eq.s32.totalorder %s28, 0
      %p165 = por %p163, %p164
      %s167 = sadd.s32 %s166, 1
      %p170 = scmp.eq.s32.totalorder %s22, 1
      %p171 = scmp.ne.s32.totalorder %s166, %s168
      %p172 = scmp.eq.s32.totalorder %s22, 0
      %p173 = por %p171, %p172
      %p174 = scmp.ne.s32.totalorder %s166, %s168
      %p175 = scmp.eq.s32.totalorder %s27, 1
      %p176 = por %p174, %p175
      %p177 = scmp.ne.s32.totalorder %s168, %s169
      %p178 = scmp.eq.s32.totalorder %s27, 0
      %p179 = por %p177, %p178
      %p180 = scmp.ne.s32.totalorder %s168, %s169
      %p181 = scmp.eq.s32.totalorder %s28, 1
      %p182 = por %p180, %p181
      %p184 = scmp.ne.s32.totalorder %s169, %s183
      %p185 = scmp.eq.s32.totalorder %s28, 0
      %p186 = por %p184, %p185
      %s188 = sadd.s32 %s187, 1
      %p191 = scmp.eq.s32.totalorder %s22, 1
      %p192 = scmp.ne.s32.totalorder %s187, %s189
      %p193 = scmp.eq.s32.totalorder %s22, 0
      %p194 = por %p192, %p193
      %p195 = scmp.ne.s32.totalorder %s187, %s189
      %p196 = scmp.eq.s32.totalorder %s27, 1
      %p197 = por %p195, %p196
      %p198 = scmp.ne.s32.totalorder %s189, %s190
      %p199 = scmp.eq.s32.totalorder %s27, 0
      %p200 = por %p198, %p199
      %p201 = scmp.ne.s32.totalorder %s189, %s190
      %p202 = scmp.eq.s32.totalorder %s28, 1
      %p203 = por %p201, %p202
      %p205 = scmp.ne.s32.totalorder %s190, %s204
      %p206 = scmp.eq.s32.totalorder %s28, 0
      %p207 = por %p205, %p206
      %s208 = ssub.s32 %s22, %s29
      %p209 = scmp.eq.s32.totalorder %s208, 0
      %s211 = sadd.s32 %s210, 1
      %s212 = scalar_select %p209, %s210, %s211
      %p215 = pneg %p209
      %p216 = scmp.eq.s32.totalorder %s22, 1
      %p217 = por %p215, %p216
      %p218 = scmp.ne.s32.totalorder %s210, %s213
      %p219 = scmp.eq.s32.totalorder %s22, 0
      %p220 = por %p218, %p219
      %p221 = scmp.ne.s32.totalorder %s210, %s213
      %p222 = scmp.eq.s32.totalorder %s27, 1
      %p223 = por %p221, %p222
      %p224 = scmp.ne.s32.totalorder %s213, %s214
      %p225 = scmp.eq.s32.totalorder %s27, 0
      %p226 = por %p224, %p225
      %p227 = scmp.ne.s32.totalorder %s213, %s214
      %p228 = scmp.eq.s32.totalorder %s28, 1
      %p229 = por %p227, %p228
      %p231 = scmp.ne.s32.totalorder %s214, %s230
      %p232 = scmp.eq.s32.totalorder %s28, 0
      %p233 = por %p231, %p232
      %p234 = scmp.le.s32.totalorder 1, %s22
      %p235 = scmp.lt.s32.totalorder %s22, 3
      %p236 = pnand %p234, %p235
      %p237 = pneg %p236
      // Predicated region
      $region9: #{tpu_custom_call.1} parent=5 // pred_check
        _
      $region10: #{tpu_custom_call.1} parent=5 // pred_check_branch
        %239 = sbr.rel (%p236) target = $region12
      $region11: #{tpu_custom_call.1} parent=5 // pred_region
        %s240 = ssub.s32 %s22, 1
        // Predicated region
        $region13: #{tpu_custom_call.1} parent=11 // pred_check
          %p241 = pneg %p95
        $region14: #{tpu_custom_call.1} parent=11 // pred_check_branch
          %243 = sbr.rel (%p241) target = $region16
        $region15: #{tpu_custom_call.1} parent=11 // pred_region
          %245 = vsyncadd [#allocation6], 0
          %s247 = sshll.u32 %s2, 4
          %s248 = int_to_ptr.hbm [resolvable:$true] %s247
          %s249 = sshll.u32 [#allocation5], 4
          %s250 = int_to_ptr.vmem [resolvable:$true] %s249
          %252 = dma.hbm_to_vmem [thread:$0]  %s248, 64, %s250, [#allocation6]
        $region16: #{tpu_custom_call.1} parent=11 // pred_fallthru
          _
        // Predicated region
        $region17: #{tpu_custom_call.1} parent=11 // pred_check
          %p253 = pneg %p116
        $region18: #{tpu_custom_call.1} parent=11 // pred_check_branch
          %255 = sbr.rel (%p253) target = $region20
        $region19: #{tpu_custom_call.1} parent=11 // pred_region
          %257 = vsyncadd [#allocation6], 0
          %s259 = sshll.u32 %s3, 4
          %s260 = int_to_ptr.hbm [resolvable:$true] %s259
          %s261 = sshll.u32 [#allocation7], 4
          %s262 = int_to_ptr.vmem [resolvable:$true] %s261
          %264 = dma.hbm_to_vmem [thread:$0]  %s260, 64, %s262, [#allocation6]
        $region20: #{tpu_custom_call.1} parent=11 // pred_fallthru
          _
        // Predicated region
        $region21: #{tpu_custom_call.1} parent=11 // pred_check
          %p265 = pneg %p137
        $region22: #{tpu_custom_call.1} parent=11 // pred_check_branch
          %267 = sbr.rel (%p265) target = $region24
        $region23: #{tpu_custom_call.1} parent=11 // pred_region
          %269 = vsyncadd [#allocation9], 0
          %s271 = sshll.u32 %s4, 4
          %s272 = int_to_ptr.hbm [resolvable:$true] %s271
          %s273 = sshll.u32 [#allocation8], 4
          %s274 = int_to_ptr.vmem [resolvable:$true] %s273
          %276 = dma.hbm_to_vmem [thread:$0]  %s272, 64, %s274, [#allocation9]
        $region24: #{tpu_custom_call.1} parent=11 // pred_fallthru
          _
        // Predicated region
        $region25: #{tpu_custom_call.1} parent=11 // pred_check
          %p277 = pneg %p158
        $region26: #{tpu_custom_call.1} parent=11 // pred_check_branch
          %279 = sbr.rel (%p277) target = $region28
        $region27: #{tpu_custom_call.1} parent=11 // pred_region
          _
        $region28: #{tpu_custom_call.1} parent=11 // pred_fallthru
          _
        // Predicated region
        $region29: #{tpu_custom_call.1} parent=11 // pred_check
          %p280 = pneg %p179
        $region30: #{tpu_custom_call.1} parent=11 // pred_check_branch
          %282 = sbr.rel (%p280) target = $region32
        $region31: #{tpu_custom_call.1} parent=11 // pred_region
          %284 = vsyncadd [#allocation9], 0
          %s286 = sshll.u32 %s6, 4
          %s287 = int_to_ptr.hbm [resolvable:$true] %s286
          %s288 = sshll.u32 [#allocation10], 4
          %s289 = int_to_ptr.vmem [resolvable:$true] %s288
          %291 = dma.hbm_to_vmem [thread:$0]  %s287, 128, %s289, [#allocation9]
        $region32: #{tpu_custom_call.1} parent=11 // pred_fallthru
          _
        // Predicated region
        $region33: #{tpu_custom_call.1} parent=11 // pred_check
          %p292 = pneg %p200
        $region34: #{tpu_custom_call.1} parent=11 // pred_check_branch
          %294 = sbr.rel (%p292) target = $region36
        $region35: #{tpu_custom_call.1} parent=11 // pred_region
          _
        $region36: #{tpu_custom_call.1} parent=11 // pred_fallthru
          _
      $region12: #{tpu_custom_call.1} parent=5 // pred_fallthru
        _
      %p295 = scmp.lt.s32.totalorder %s22, 2
      // Predicated region
      $region37: #{tpu_custom_call.1} parent=5 // pred_check
        %p296 = pneg %p295
      $region38: #{tpu_custom_call.1} parent=5 // pred_check_branch
        %298 = sbr.rel (%p296) target = $region40
      $region39: #{tpu_custom_call.1} parent=5 // pred_region
        // Predicated region
        $region41: #{tpu_custom_call.1} parent=39 // pred_check
          %p299 = pneg %p42
        $region42: #{tpu_custom_call.1} parent=39 // pred_check_branch
          %301 = sbr.rel (%p299) target = $region44
        $region43: #{tpu_custom_call.1} parent=39 // pred_region
          %p302 = scmp.lt.s32.totalorder %s22, 1
          %s303 = scalar_select %p302, %s22, 1
          %s304 = smul.addr %s303, 2
          %s305 = smul.addr %s304, 4
          %s306 = scalar_lea.vmem %s0, %s305
        $region44: #{tpu_custom_call.1} parent=39 // pred_fallthru
          _
        // Predicated region
        $region45: #{tpu_custom_call.1} parent=39 // pred_check
          %p307 = pneg %p68
        $region46: #{tpu_custom_call.1} parent=39 // pred_check_branch
          %309 = sbr.rel (%p307) target = $region48
        $region47: #{tpu_custom_call.1} parent=39 // pred_region
          %s310 = sand.u32 %s58, 1
          %s311 = scalar_lea.sflag [#allocation3], %s310
          %s312 = sand.u32 %s58, 1
          %s313 = smul.addr %s312, 8
          %s314 = scalar_lea.vmem [#allocation2], %s313
          %316 = vsyncadd %s311, 0
          %s317 = smul.addr %s22, 2
          %s318 = smul.addr %s317, 4
          %s319 = scalar_lea.hbm %s1, %s318
          %s321 = sshll.u32 %s319, 4
          %s322 = int_to_ptr.hbm [resolvable:$true] %s321
          %s323 = sshll.u32 %s314, 4
          %s324 = int_to_ptr.vmem [resolvable:$true] %s323
          %326 = dma.hbm_to_vmem [thread:$0]  %s322, 128, %s324, %s311
        $region48: #{tpu_custom_call.1} parent=39 // pred_fallthru
          _
      $region40: #{tpu_custom_call.1} parent=5 // pred_fallthru
        _
      %p327 = scmp.le.s32.totalorder 1, %s22
      %p328 = scmp.lt.s32.totalorder %s22, 3
      %p329 = pnand %p327, %p328
      %p330 = pneg %p329
      // Predicated region
      $region49: #{tpu_custom_call.1} parent=5 // pred_check
        _
      $region50: #{tpu_custom_call.1} parent=5 // pred_check_branch
        %332 = sbr.rel (%p329) target = $region52
      $region51: #{tpu_custom_call.1} parent=5 // pred_region
        %s333 = ssub.s32 %s22, 1
        %s334 = sand.u32 %s61, 1
        %s335 = scalar_lea.sflag [#allocation3], %s334
        %s336 = sand.u32 %s61, 1
        %s337 = smul.addr %s336, 8
        %s338 = scalar_lea.vmem [#allocation2], %s337
        // Predicated region
        $region53: #{tpu_custom_call.1} parent=51 // pred_check
          %p339 = pneg %p74
        $region54: #{tpu_custom_call.1} parent=51 // pred_check_branch
          %341 = sbr.rel (%p339) target = $region56
        $region55: #{tpu_custom_call.1} parent=51 // pred_region
          %343 = dma.done %s335, 128
        $region56: #{tpu_custom_call.1} parent=51 // pred_fallthru
          _
        // Predicated region
        $region57: #{tpu_custom_call.1} parent=51 // pred_check
          %p344 = pneg %p95
        $region58: #{tpu_custom_call.1} parent=51 // pred_check_branch
          %346 = sbr.rel (%p344) target = $region60
        $region59: #{tpu_custom_call.1} parent=51 // pred_region
          %348 = dma.done [#allocation6], 64
        $region60: #{tpu_custom_call.1} parent=51 // pred_fallthru
          _
        // Predicated region
        $region61: #{tpu_custom_call.1} parent=51 // pred_check
          %p349 = pneg %p116
        $region62: #{tpu_custom_call.1} parent=51 // pred_check_branch
          %351 = sbr.rel (%p349) target = $region64
        $region63: #{tpu_custom_call.1} parent=51 // pred_region
          %353 = dma.done [#allocation6], 64
        $region64: #{tpu_custom_call.1} parent=51 // pred_fallthru
          _
        // Predicated region
        $region65: #{tpu_custom_call.1} parent=51 // pred_check
          %p354 = pneg %p137
        $region66: #{tpu_custom_call.1} parent=51 // pred_check_branch
          %356 = sbr.rel (%p354) target = $region68
        $region67: #{tpu_custom_call.1} parent=51 // pred_region
          %358 = dma.done [#allocation9], 64
        $region68: #{tpu_custom_call.1} parent=51 // pred_fallthru
          _
        // Predicated region
        $region69: #{tpu_custom_call.1} parent=51 // pred_check
          %p359 = pneg %p179
        $region70: #{tpu_custom_call.1} parent=51 // pred_check_branch
          %361 = sbr.rel (%p359) target = $region72
        $region71: #{tpu_custom_call.1} parent=51 // pred_region
          %363 = dma.done [#allocation9], 128
        $region72: #{tpu_custom_call.1} parent=51 // pred_fallthru
          _
        %p364 = scmp.lt.s32.totalorder %s27, 1
        %s365 = scalar_select %p364, %s27, 1
        %s366 = smul.addr %s365, 2
        %s367 = smul.addr %s366, 4
        %s368 = scalar_lea.vmem %s0, %s367
        %p369 = pneg %p48
        %p370 = pneg %p45
        %s371 = sand.u32 %s61, 1
        %s372 = scalar_lea.sflag [#allocation3], %s371
        %s373 = sand.u32 %s61, 1
        %s374 = smul.addr %s373, 8
        %s375 = scalar_lea.vmem [#allocation2], %s374
        %p376 = pneg %p74
        %p377 = pneg %p71
        %p378 = pneg %p95
        %p379 = pneg %p92
        %p380 = pneg %p116
        %p381 = pneg %p113
        %p382 = pneg %p137
        %p383 = pneg %p134
        %p384 = pneg %p158
        %p385 = pneg %p155
        %p386 = pneg %p179
        %p387 = pneg %p176
        %p388 = pneg %p200
        %p389 = pneg %p197
        %p390 = pneg %p226
        %p391 = pneg %p223
        %s392 = sand.u32 %s213, 1
        %s393 = scalar_lea.sflag [#allocation4], %s392
        %s394 = sand.u32 %s213, 1
        %s395 = smul.addr %s394, 16
        %s396 = scalar_lea.vmem [#allocation11], %s395
        %p397 = scmp.lt.s32.totalorder %s27, 1
        %s398 = scalar_select %p397, %s27, 1
        %s399 = smul.addr %s398, 2
        %s400 = smul.addr %s399, 4
        %s401 = scalar_lea.vmem %s0, %s400
        %v403 = vld [vmem:[#allocation5] sm:$0xf]
        %v404 = vld [vmem:[#allocation7] sm:$0xf]
        %v405 = vld [vmem:[#allocation8] sm:$0xf]
        %v406 = vld [vmem:[#allocation10] sm:$0xff]
        %v407 = vld [vmem:[%s5] sm:$0xff]
        %v408 = vld [vmem:[%s7] sm:$0xff]
        %v409 = vld [vmem:[%s401] sm:$0xff]
        %411 = vst [vmem:[#allocation1] ss:$2 sm:$0xff] %v409
        %v412 = vld.sshfl [vmem:[#allocation1] sm:$0xff pattern:$0x75316420]
        %v413 = vld.sshfl [vmem:[#allocation1 + $0x8] sm:$0xff pattern:$0x75316420]
        %414 = vrot.lane.b32.xlu0 %v412, 17
        %v415 = vpop.permute.xlu0 %414
        %416 = vrot.lane.b32.xlu0 %v413, 17
        %v417 = vpop.permute.xlu0 %416
        %vm418 = vcmask 138240
        %v419 = vsel %vm418, %v415, %v417
        %v423 = vsel %vm418, 0.0, %v415
        %v424 = vsel %vm418, %v417, 0.0
        %v426 = vperm.slane %v403, 0
        %v427 = vperm.slane %v403, 2
        %v430 = vperm.slane %v426, 0
        %v431 = vperm.slane %v427, 0
        %v432 = vmul.f32 %v423, %v430
        %v433 = vmul.f32 %v419, %v431
        %v434 = vperm.slane %v403, 1
        %v435 = vperm.slane %v403, 3
        %v438 = vperm.slane %v434, 1
        %v439 = vperm.slane %v435, 1
        %442 = vrot.lane.b32.xlu0 %v438, 2
        %v443 = vpop.permute.xlu0 %442
        %444 = vrot.lane.b32.xlu0 %v439, 2
        %v445 = vpop.permute.xlu0 %444
        %vm446 = vcmask 15360
        %v447 = vsel %vm446, %v443, %v445
        %v451 = vmul.f32 %v423, %v443
        %v452 = vmul.f32 %v419, %v447
        %v453 = vmul.f32 %v424, %v445
        %456 = vrot.lane.b32.xlu0 %v430, 16
        %v457 = vpop.permute.xlu0 %456
        %458 = vrot.lane.b32.xlu0 %v431, 16
        %v459 = vpop.permute.xlu0 %458
        %vm460 = vcmask 130048
        %v461 = vsel %vm460, %v457, %v459
        %v465 = vmul.f32 %v423, %v457
        %v466 = vmul.f32 %v419, %v461
        %v467 = vmul.f32 %v424, %v459
        %468 = vrot.lane.b32.xlu0 %v438, 18
        %v469 = vpop.permute.xlu0 %468
        %470 = vrot.lane.b32.xlu0 %v439, 18
        %v471 = vpop.permute.xlu0 %470
        %vm472 = vcmask 146432
        %v473 = vsel %vm472, %v469, %v471
        %v477 = vmul.f32 %v423, %v469
        %v478 = vmul.f32 %v419, %v473
        %v479 = vmul.f32 %v424, %v471
        %480 = vrot.lane.b32.xlu0 %v430, 32
        %v481 = vpop.permute.xlu0 %480
        %482 = vrot.lane.b32.xlu0 %v431, 32
        %v483 = vpop.permute.xlu0 %482
        %vm484 = vcmask 261120
        %v485 = vsel %vm484, %v481, %v483
        %v489 = vmul.f32 %v423, %v481
        %v490 = vmul.f32 %v419, %v485
        %v491 = vmul.f32 %v424, %v483
        %492 = vrot.lane.b32.xlu0 %v438, 34
        %v493 = vpop.permute.xlu0 %492
        %494 = vrot.lane.b32.xlu0 %v439, 34
        %v495 = vpop.permute.xlu0 %494
        %vm496 = vcmask 277504
        %v497 = vsel %vm496, %v493, %v495
        %v501 = vmul.f32 %v423, %v493
        %v502 = vmul.f32 %v419, %v497
        %v503 = vmul.f32 %v424, %v495
        %v506 = vrot.slane %v423, 4
        %v507 = vrot.slane %v419, 4
        %v508 = vrot.slane %v424, 4
        %509 = vrot.lane.b32.xlu0 %v506, 127
        %v510 = vpop.permute.xlu0 %509
        %511 = vrot.lane.b32.xlu0 %v507, 127
        %v512 = vpop.permute.xlu0 %511
        %513 = vrot.lane.b32.xlu0 %v508, 127
        %v514 = vpop.permute.xlu0 %513
        %vm515 = vcmask 1039360
        %v516 = vsel %vm515, %v510, %v512
        %v517 = vsel %vm515, %v512, %v514
        %523 = vrot.lane.b32.xlu0 %v451, 126
        %v524 = vpop.permute.xlu0 %523
        %525 = vrot.lane.b32.xlu0 %v452, 126
        %v526 = vpop.permute.xlu0 %525
        %527 = vrot.lane.b32.xlu0 %v453, 126
        %v528 = vpop.permute.xlu0 %527
        %vm529 = vcmask 1031168
        %v530 = vsel %vm529, %v524, %v526
        %v531 = vsel %vm529, %v526, %v528
        %v537 = vrot.slane %v465, 4
        %v538 = vrot.slane %v466, 4
        %v539 = vrot.slane %v467, 4
        %540 = vrot.lane.b32.xlu0 %v537, 112
        %v541 = vpop.permute.xlu0 %540
        %542 = vrot.lane.b32.xlu0 %v538, 112
        %v543 = vpop.permute.xlu0 %542
        %544 = vrot.lane.b32.xlu0 %v539, 112
        %v545 = vpop.permute.xlu0 %544
        %vm546 = vcmask 916480
        %v547 = vsel %vm546, %v541, %v543
        %v548 = vsel %vm546, %v543, %v545
        %551 = vrot.lane.b32.xlu0 %v423, 111
        %v552 = vpop.permute.xlu0 %551
        %553 = vrot.lane.b32.xlu0 %v419, 111
        %v554 = vpop.permute.xlu0 %553
        %555 = vrot.lane.b32.xlu0 %v424, 111
        %v556 = vpop.permute.xlu0 %555
        %vm557 = vcmask 908288
        %v558 = vsel %vm557, %v552, %v554
        %v559 = vsel %vm557, %v554, %v556
        %v565 = vrot.slane %v477, 4
        %v566 = vrot.slane %v478, 4
        %v567 = vrot.slane %v479, 4
        %568 = vrot.lane.b32.xlu0 %v565, 110
        %v569 = vpop.permute.xlu0 %568
        %570 = vrot.lane.b32.xlu0 %v566, 110
        %v571 = vpop.permute.xlu0 %570
        %572 = vrot.lane.b32.xlu0 %v567, 110
        %v573 = vpop.permute.xlu0 %572
        %vm574 = vcmask 900096
        %v575 = vsel %vm574, %v569, %v571
        %v576 = vsel %vm574, %v571, %v573
        %582 = vrot.lane.b32.xlu0 %v489, 96
        %v583 = vpop.permute.xlu0 %582
        %584 = vrot.lane.b32.xlu0 %v490, 96
        %v585 = vpop.permute.xlu0 %584
        %586 = vrot.lane.b32.xlu0 %v491, 96
        %v587 = vpop.permute.xlu0 %586
        %vm588 = vcmask 785408
        %v589 = vsel %vm588, %v583, %v585
        %v590 = vsel %vm588, %v585, %v587
        %593 = vrot.lane.b32.xlu0 %v506, 95
        %v594 = vpop.permute.xlu0 %593
        %595 = vrot.lane.b32.xlu0 %v507, 95
        %v596 = vpop.permute.xlu0 %595
        %597 = vrot.lane.b32.xlu0 %v508, 95
        %v598 = vpop.permute.xlu0 %597
        %vm599 = vcmask 777216
        %v600 = vsel %vm599, %v594, %v596
        %v601 = vsel %vm599, %v596, %v598
        %607 = vrot.lane.b32.xlu0 %v501, 94
        %v608 = vpop.permute.xlu0 %607
        %609 = vrot.lane.b32.xlu0 %v502, 94
        %v610 = vpop.permute.xlu0 %609
        %611 = vrot.lane.b32.xlu0 %v503, 94
        %v612 = vpop.permute.xlu0 %611
        %vm613 = vcmask 769024
        %v614 = vsel %vm613, %v608, %v610
        %v615 = vsel %vm613, %v610, %v612
        %vm618 = vcmask 1043456
        %v619 = vsel %vm618, %v432, %v516
        %v620 = vsel %vm618, %v433, %v517
        %v621 = vsel %vm618, %v530, %v547
        %v622 = vsel %vm618, %v531, %v548
        %v623 = vsel %vm618, %v558, %v575
        %v624 = vsel %vm618, %v559, %v576
        %v625 = vsel %vm618, %v589, %v600
        %v626 = vsel %vm618, %v590, %v601
        %v627 = vpack.c.bf16 %v621, %v619
        %v628 = vpack.c.bf16 %v622, %v620
        %v629 = vpack.c.bf16 %v625, %v623
        %v630 = vpack.c.bf16 %v626, %v624
        %v631 = vpack.c.bf16 %v614, %v614
        %v632 = vpack.c.bf16 %v615, %v615
        %vm633 = vcmask 293888
        %v635 = vsel %vm633, %v404, 0
        %vm637 = vcmask 1041408
        %v639 = vsel %vm637, %v631, 0
        %v642 = vsel %vm637, %v632, 0
        %644 = vmatpush.bf16.msra.mxu0 0
        %645 = vmatpush.bf16.msra.mxu0 0
        %646 = vmatpush.bf16.msra.mxu0 0
        %647 = vmatpush.bf16.msra.mxu0 0
        %648 = vmatpush.bf16.msra.mxu0 0
        %649 = vmatpush.bf16.msra.mxu0 %v639
        %650 = vmatpush.bf16.msra.mxu0 %v629
        %651 = vmatpush.bf16.msra.mxu0 %v627
        %652 = vmatmul.bf16.gmra.mxu0 %v635
        %v653 = vpop.f32.mrf.mxu0
        %v654 = vadd.f32 0.0, %v653
        %v655 = vpop.f32.mrf.mxu0
        %656 = vdwg.mxu0
        %657 = vmatpush.bf16.msra.mxu0 0
        %658 = vmatpush.bf16.msra.mxu0 0
        %659 = vmatpush.bf16.msra.mxu0 0
        %660 = vmatpush.bf16.msra.mxu0 0
        %661 = vmatpush.bf16.msra.mxu0 0
        %662 = vmatpush.bf16.msra.mxu0 %v642
        %663 = vmatpush.bf16.msra.mxu0 %v630
        %664 = vmatpush.bf16.msra.mxu0 %v628
        %665 = vmatmul.bf16.gmra.mxu0 %v635
        %v666 = vpop.f32.mrf.mxu0
        %v667 = vadd.f32 0.0, %v666
        %v668 = vpop.f32.mrf.mxu0
        %669 = vdwg.mxu0
        %vm670 = vcmp.ge.f32.partialorder %v654, 0.0
        %vm671 = vcmp.ge.f32.partialorder %v667, 0.0
        %v672 = vmul.f32 %v654, 0.2
        %v673 = vmul.f32 %v667, 0.2
        %v674 = vsel %vm670, %v654, %v672
        %v675 = vsel %vm671, %v667, %v673
        %678 = vrot.lane.b32.xlu0 %v674, 17
        %v679 = vpop.permute.xlu0 %678
        %680 = vrot.lane.b32.xlu0 %v675, 17
        %v681 = vpop.permute.xlu0 %680
        %v682 = vsel %vm418, %v679, %v681
        %v686 = vsel %vm418, 0.0, %v679
        %v687 = vsel %vm418, %v681, 0.0
        %v688 = vmul.f32 %v686, %v430
        %v689 = vmul.f32 %v682, %v431
        %v690 = vmul.f32 %v686, %v443
        %v691 = vmul.f32 %v682, %v447
        %v692 = vmul.f32 %v687, %v445
        %v693 = vmul.f32 %v686, %v457
        %v694 = vmul.f32 %v682, %v461
        %v695 = vmul.f32 %v687, %v459
        %v696 = vmul.f32 %v686, %v469
        %v697 = vmul.f32 %v682, %v473
        %v698 = vmul.f32 %v687, %v471
        %v699 = vmul.f32 %v686, %v481
        %v700 = vmul.f32 %v682, %v485
        %v701 = vmul.f32 %v687, %v483
        %v702 = vmul.f32 %v686, %v493
        %v703 = vmul.f32 %v682, %v497
        %v704 = vmul.f32 %v687, %v495
        %707 = vrot.lane.b32.xlu0 %v686, 127
        %v708 = vpop.permute.xlu0 %707
        %709 = vrot.lane.b32.xlu0 %v682, 127
        %v710 = vpop.permute.xlu0 %709
        %711 = vrot.lane.b32.xlu0 %v687, 127
        %v712 = vpop.permute.xlu0 %711
        %v713 = vsel %vm515, %v708, %v710
        %v714 = vsel %vm515, %v710, %v712
        %720 = vrot.lane.b32.xlu0 %v690, 126
        %v721 = vpop.permute.xlu0 %720
        %722 = vrot.lane.b32.xlu0 %v691, 126
        %v723 = vpop.permute.xlu0 %722
        %724 = vrot.lane.b32.xlu0 %v692, 126
        %v725 = vpop.permute.xlu0 %724
        %v726 = vsel %vm529, %v721, %v723
        %v727 = vsel %vm529, %v723, %v725
        %733 = vrot.lane.b32.xlu0 %v693, 112
        %v734 = vpop.permute.xlu0 %733
        %735 = vrot.lane.b32.xlu0 %v694, 112
        %v736 = vpop.permute.xlu0 %735
        %737 = vrot.lane.b32.xlu0 %v695, 112
        %v738 = vpop.permute.xlu0 %737
        %v739 = vsel %vm546, %v734, %v736
        %v740 = vsel %vm546, %v736, %v738
        %743 = vrot.lane.b32.xlu0 %v686, 111
        %v744 = vpop.permute.xlu0 %743
        %745 = vrot.lane.b32.xlu0 %v682, 111
        %v746 = vpop.permute.xlu0 %745
        %747 = vrot.lane.b32.xlu0 %v687, 111
        %v748 = vpop.permute.xlu0 %747
        %v749 = vsel %vm557, %v744, %v746
        %v750 = vsel %vm557, %v746, %v748
        %756 = vrot.lane.b32.xlu0 %v696, 110
        %v757 = vpop.permute.xlu0 %756
        %758 = vrot.lane.b32.xlu0 %v697, 110
        %v759 = vpop.permute.xlu0 %758
        %760 = vrot.lane.b32.xlu0 %v698, 110
        %v761 = vpop.permute.xlu0 %760
        %v762 = vsel %vm574, %v757, %v759
        %v763 = vsel %vm574, %v759, %v761
        %769 = vrot.lane.b32.xlu0 %v699, 96
        %v770 = vpop.permute.xlu0 %769
        %771 = vrot.lane.b32.xlu0 %v700, 96
        %v772 = vpop.permute.xlu0 %771
        %773 = vrot.lane.b32.xlu0 %v701, 96
        %v774 = vpop.permute.xlu0 %773
        %v775 = vsel %vm588, %v770, %v772
        %v776 = vsel %vm588, %v772, %v774
        %779 = vrot.lane.b32.xlu0 %v686, 95
        %v780 = vpop.permute.xlu0 %779
        %781 = vrot.lane.b32.xlu0 %v682, 95
        %v782 = vpop.permute.xlu0 %781
        %783 = vrot.lane.b32.xlu0 %v687, 95
        %v784 = vpop.permute.xlu0 %783
        %v785 = vsel %vm599, %v780, %v782
        %v786 = vsel %vm599, %v782, %v784
        %792 = vrot.lane.b32.xlu0 %v702, 94
        %v793 = vpop.permute.xlu0 %792
        %794 = vrot.lane.b32.xlu0 %v703, 94
        %v795 = vpop.permute.xlu0 %794
        %796 = vrot.lane.b32.xlu0 %v704, 94
        %v797 = vpop.permute.xlu0 %796
        %v798 = vsel %vm613, %v793, %v795
        %v799 = vsel %vm613, %v795, %v797
        %v802 = vpack.c.bf16 %v713, %v688
        %v803 = vpack.c.bf16 %v714, %v689
        %v804 = vpack.c.bf16 %v739, %v726
        %v805 = vpack.c.bf16 %v740, %v727
        %v806 = vpack.c.bf16 %v762, %v749
        %v807 = vpack.c.bf16 %v763, %v750
        %v808 = vpack.c.bf16 %v785, %v775
        %v809 = vpack.c.bf16 %v786, %v776
        %v810 = vpack.c.bf16 %v798, %v798
        %v811 = vpack.c.bf16 %v799, %v799
        %813 = vset.pattern.permute.xlu0 0
        %814 = vperm.xlu0 %813, %v407
        %v815 = vpop.permute.xlu0 %814
        %vm817 = vcmask 588800
        %v819 = vsel %vm817, %v405, 0
        %v822 = vsel %vm618, %v810, 0
        %v825 = vsel %vm618, %v811, 0
        %827 = vmatpush.bf16.msra.mxu0 0
        %828 = vmatpush.bf16.msra.mxu0 0
        %829 = vmatpush.bf16.msra.mxu0 0
        %830 = vmatpush.bf16.msra.mxu0 %v822
        %831 = vmatpush.bf16.msra.mxu0 %v808
        %832 = vmatpush.bf16.msra.mxu0 %v806
        %833 = vmatpush.bf16.msra.mxu0 %v804
        %834 = vmatpush.bf16.msra.mxu0 %v802
        %835 = vmatmul.bf16.gmra.mxu0 %v819
        %v836 = vpop.f32.mrf.mxu0
        %v837 = vadd.f32 %v815, %v836
        %v838 = vpop.f32.mrf.mxu0
        %839 = vdwg.mxu0
        %840 = vmatpush.bf16.msra.mxu0 0
        %841 = vmatpush.bf16.msra.mxu0 0
        %842 = vmatpush.bf16.msra.mxu0 0
        %843 = vmatpush.bf16.msra.mxu0 %v825
        %844 = vmatpush.bf16.msra.mxu0 %v809
        %845 = vmatpush.bf16.msra.mxu0 %v807
        %846 = vmatpush.bf16.msra.mxu0 %v805
        %847 = vmatpush.bf16.msra.mxu0 %v803
        %848 = vmatmul.bf16.gmra.mxu0 %v819
        %v849 = vpop.f32.mrf.mxu0
        %v850 = vadd.f32 %v815, %v849
        %v851 = vpop.f32.mrf.mxu0
        %852 = vdwg.mxu0
        %vm853 = vcmp.ge.f32.partialorder %v837, 0.0
        %vm854 = vcmp.ge.f32.partialorder %v850, 0.0
        %v855 = vmul.f32 %v837, 0.2
        %v856 = vmul.f32 %v850, 0.2
        %v857 = vsel %vm853, %v837, %v855
        %v858 = vsel %vm854, %v850, %v856
        %861 = vrot.lane.b32.xlu0 %v857, 17
        %v862 = vpop.permute.xlu0 %861
        %863 = vrot.lane.b32.xlu0 %v858, 17
        %v864 = vpop.permute.xlu0 %863
        %v865 = vsel %vm418, %v862, %v864
        %v869 = vsel %vm418, 0.0, %v862
        %v870 = vsel %vm418, %v864, 0.0
        %v871 = vmul.f32 %v869, %v430
        %v872 = vmul.f32 %v865, %v431
        %v873 = vmul.f32 %v869, %v443
        %v874 = vmul.f32 %v865, %v447
        %v875 = vmul.f32 %v870, %v445
        %v876 = vmul.f32 %v869, %v457
        %v877 = vmul.f32 %v865, %v461
        %v878 = vmul.f32 %v870, %v459
        %v879 = vmul.f32 %v869, %v469
        %v880 = vmul.f32 %v865, %v473
        %v881 = vmul.f32 %v870, %v471
        %v882 = vmul.f32 %v869, %v481
        %v883 = vmul.f32 %v865, %v485
        %v884 = vmul.f32 %v870, %v483
        %v885 = vmul.f32 %v869, %v493
        %v886 = vmul.f32 %v865, %v497
        %v887 = vmul.f32 %v870, %v495
        %890 = vrot.lane.b32.xlu0 %v869, 127
        %v891 = vpop.permute.xlu0 %890
        %892 = vrot.lane.b32.xlu0 %v865, 127
        %v893 = vpop.permute.xlu0 %892
        %894 = vrot.lane.b32.xlu0 %v870, 127
        %v895 = vpop.permute.xlu0 %894
        %v896 = vsel %vm515, %v891, %v893
        %v897 = vsel %vm515, %v893, %v895
        %903 = vrot.lane.b32.xlu0 %v873, 126
        %v904 = vpop.permute.xlu0 %903
        %905 = vrot.lane.b32.xlu0 %v874, 126
        %v906 = vpop.permute.xlu0 %905
        %907 = vrot.lane.b32.xlu0 %v875, 126
        %v908 = vpop.permute.xlu0 %907
        %v909 = vsel %vm529, %v904, %v906
        %v910 = vsel %vm529, %v906, %v908
        %916 = vrot.lane.b32.xlu0 %v876, 112
        %v917 = vpop.permute.xlu0 %916
        %918 = vrot.lane.b32.xlu0 %v877, 112
        %v919 = vpop.permute.xlu0 %918
        %920 = vrot.lane.b32.xlu0 %v878, 112
        %v921 = vpop.permute.xlu0 %920
        %v922 = vsel %vm546, %v917, %v919
        %v923 = vsel %vm546, %v919, %v921
        %926 = vrot.lane.b32.xlu0 %v869, 111
        %v927 = vpop.permute.xlu0 %926
        %928 = vrot.lane.b32.xlu0 %v865, 111
        %v929 = vpop.permute.xlu0 %928
        %930 = vrot.lane.b32.xlu0 %v870, 111
        %v931 = vpop.permute.xlu0 %930
        %v932 = vsel %vm557, %v927, %v929
        %v933 = vsel %vm557, %v929, %v931
        %939 = vrot.lane.b32.xlu0 %v879, 110
        %v940 = vpop.permute.xlu0 %939
        %941 = vrot.lane.b32.xlu0 %v880, 110
        %v942 = vpop.permute.xlu0 %941
        %943 = vrot.lane.b32.xlu0 %v881, 110
        %v944 = vpop.permute.xlu0 %943
        %v945 = vsel %vm574, %v940, %v942
        %v946 = vsel %vm574, %v942, %v944
        %952 = vrot.lane.b32.xlu0 %v882, 96
        %v953 = vpop.permute.xlu0 %952
        %954 = vrot.lane.b32.xlu0 %v883, 96
        %v955 = vpop.permute.xlu0 %954
        %956 = vrot.lane.b32.xlu0 %v884, 96
        %v957 = vpop.permute.xlu0 %956
        %v958 = vsel %vm588, %v953, %v955
        %v959 = vsel %vm588, %v955, %v957
        %962 = vrot.lane.b32.xlu0 %v869, 95
        %v963 = vpop.permute.xlu0 %962
        %964 = vrot.lane.b32.xlu0 %v865, 95
        %v965 = vpop.permute.xlu0 %964
        %966 = vrot.lane.b32.xlu0 %v870, 95
        %v967 = vpop.permute.xlu0 %966
        %v968 = vsel %vm599, %v963, %v965
        %v969 = vsel %vm599, %v965, %v967
        %975 = vrot.lane.b32.xlu0 %v885, 94
        %v976 = vpop.permute.xlu0 %975
        %977 = vrot.lane.b32.xlu0 %v886, 94
        %v978 = vpop.permute.xlu0 %977
        %979 = vrot.lane.b32.xlu0 %v887, 94
        %v980 = vpop.permute.xlu0 %979
        %v981 = vsel %vm613, %v976, %v978
        %v982 = vsel %vm613, %v978, %v980
        %v985 = vld [vmem:[%s338] sm:$0xff]
        %987 = vst [vmem:[#allocation1] ss:$2 sm:$0xff] %v985
        %v988 = vld.sshfl [vmem:[#allocation1] sm:$0xff pattern:$0x75316420]
        %v989 = vld.sshfl [vmem:[#allocation1 + $0x8] sm:$0xff pattern:$0x75316420]
        %990 = vrot.lane.b32.xlu0 %v988, 17
        %v991 = vpop.permute.xlu0 %990
        %992 = vrot.lane.b32.xlu0 %v989, 17
        %v993 = vpop.permute.xlu0 %992
        %v994 = vsel %vm418, %v991, %v993
        %v998 = vsel %vm418, 0.0, %v991
        %v999 = vsel %vm418, %v993, 0.0
        %v1000 = vmul.f32 %v998, %v430
        %v1001 = vmul.f32 %v994, %v431
        %v1002 = vmul.f32 %v998, %v443
        %v1003 = vmul.f32 %v994, %v447
        %v1004 = vmul.f32 %v999, %v445
        %v1005 = vmul.f32 %v998, %v457
        %v1006 = vmul.f32 %v994, %v461
        %v1007 = vmul.f32 %v999, %v459
        %v1008 = vmul.f32 %v998, %v469
        %v1009 = vmul.f32 %v994, %v473
        %v1010 = vmul.f32 %v999, %v471
        %v1011 = vmul.f32 %v998, %v481
        %v1012 = vmul.f32 %v994, %v485
        %v1013 = vmul.f32 %v999, %v483
        %v1014 = vmul.f32 %v998, %v493
        %v1015 = vmul.f32 %v994, %v497
        %v1016 = vmul.f32 %v999, %v495
        %v1019 = vrot.slane %v998, 4
        %v1020 = vrot.slane %v994, 4
        %v1021 = vrot.slane %v999, 4
        %1022 = vrot.lane.b32.xlu0 %v1019, 127
        %v1023 = vpop.permute.xlu0 %1022
        %1024 = vrot.lane.b32.xlu0 %v1020, 127
        %v1025 = vpop.permute.xlu0 %1024
        %1026 = vrot.lane.b32.xlu0 %v1021, 127
        %v1027 = vpop.permute.xlu0 %1026
        %v1028 = vsel %vm515, %v1023, %v1025
        %v1029 = vsel %vm515, %v1025, %v1027
        %1035 = vrot.lane.b32.xlu0 %v1002, 126
        %v1036 = vpop.permute.xlu0 %1035
        %1037 = vrot.lane.b32.xlu0 %v1003, 126
        %v1038 = vpop.permute.xlu0 %1037
        %1039 = vrot.lane.b32.xlu0 %v1004, 126
        %v1040 = vpop.permute.xlu0 %1039
        %v1041 = vsel %vm529, %v1036, %v1038
        %v1042 = vsel %vm529, %v1038, %v1040
        %v1048 = vrot.slane %v1005, 4
        %v1049 = vrot.slane %v1006, 4
        %v1050 = vrot.slane %v1007, 4
        %1051 = vrot.lane.b32.xlu0 %v1048, 112
        %v1052 = vpop.permute.xlu0 %1051
        %1053 = vrot.lane.b32.xlu0 %v1049, 112
        %v1054 = vpop.permute.xlu0 %1053
        %1055 = vrot.lane.b32.xlu0 %v1050, 112
        %v1056 = vpop.permute.xlu0 %1055
        %v1057 = vsel %vm546, %v1052, %v1054
        %v1058 = vsel %vm546, %v1054, %v1056
        %1061 = vrot.lane.b32.xlu0 %v998, 111
        %v1062 = vpop.permute.xlu0 %1061
        %1063 = vrot.lane.b32.xlu0 %v994, 111
        %v1064 = vpop.permute.xlu0 %1063
        %1065 = vrot.lane.b32.xlu0 %v999, 111
        %v1066 = vpop.permute.xlu0 %1065
        %v1067 = vsel %vm557, %v1062, %v1064
        %v1068 = vsel %vm557, %v1064, %v1066
        %v1074 = vrot.slane %v1008, 4
        %v1075 = vrot.slane %v1009, 4
        %v1076 = vrot.slane %v1010, 4
        %1077 = vrot.lane.b32.xlu0 %v1074, 110
        %v1078 = vpop.permute.xlu0 %1077
        %1079 = vrot.lane.b32.xlu0 %v1075, 110
        %v1080 = vpop.permute.xlu0 %1079
        %1081 = vrot.lane.b32.xlu0 %v1076, 110
        %v1082 = vpop.permute.xlu0 %1081
        %v1083 = vsel %vm574, %v1078, %v1080
        %v1084 = vsel %vm574, %v1080, %v1082
        %1090 = vrot.lane.b32.xlu0 %v1011, 96
        %v1091 = vpop.permute.xlu0 %1090
        %1092 = vrot.lane.b32.xlu0 %v1012, 96
        %v1093 = vpop.permute.xlu0 %1092
        %1094 = vrot.lane.b32.xlu0 %v1013, 96
        %v1095 = vpop.permute.xlu0 %1094
        %v1096 = vsel %vm588, %v1091, %v1093
        %v1097 = vsel %vm588, %v1093, %v1095
        %1100 = vrot.lane.b32.xlu0 %v1019, 95
        %v1101 = vpop.permute.xlu0 %1100
        %1102 = vrot.lane.b32.xlu0 %v1020, 95
        %v1103 = vpop.permute.xlu0 %1102
        %1104 = vrot.lane.b32.xlu0 %v1021, 95
        %v1105 = vpop.permute.xlu0 %1104
        %v1106 = vsel %vm599, %v1101, %v1103
        %v1107 = vsel %vm599, %v1103, %v1105
        %1113 = vrot.lane.b32.xlu0 %v1014, 94
        %v1114 = vpop.permute.xlu0 %1113
        %1115 = vrot.lane.b32.xlu0 %v1015, 94
        %v1116 = vpop.permute.xlu0 %1115
        %1117 = vrot.lane.b32.xlu0 %v1016, 94
        %v1118 = vpop.permute.xlu0 %1117
        %v1119 = vsel %vm613, %v1114, %v1116
        %v1120 = vsel %vm613, %v1116, %v1118
        %v1123 = vsel %vm618, %v1000, %v1028
        %v1124 = vsel %vm618, %v1001, %v1029
        %v1125 = vsel %vm618, %v1041, %v1057
        %v1126 = vsel %vm618, %v1042, %v1058
        %v1127 = vsel %vm618, %v1067, %v1083
        %v1128 = vsel %vm618, %v1068, %v1084
        %v1129 = vsel %vm618, %v1096, %v1106
        %v1130 = vsel %vm618, %v1097, %v1107
        %v1131 = vpack.c.bf16 %v1125, %v1123
        %v1132 = vpack.c.bf16 %v1126, %v1124
        %v1133 = vpack.c.bf16 %v1129, %v1127
        %v1134 = vpack.c.bf16 %v1130, %v1128
        %v1135 = vpack.c.bf16 %v1119, %v1119
        %v1136 = vpack.c.bf16 %v1120, %v1120
        %v1138 = vsel %vm637, %v1135, 0
        %v1141 = vsel %vm637, %v1136, 0
        %1143 = vmatpush.bf16.msra.mxu0 0
        %1144 = vmatpush.bf16.msra.mxu0 0
        %1145 = vmatpush.bf16.msra.mxu0 0
        %1146 = vmatpush.bf16.msra.mxu0 0
        %1147 = vmatpush.bf16.msra.mxu0 0
        %1148 = vmatpush.bf16.msra.mxu0 %v1138
        %1149 = vmatpush.bf16.msra.mxu0 %v1133
        %1150 = vmatpush.bf16.msra.mxu0 %v1131
        %1151 = vmatmul.bf16.gmra.mxu0 %v635
        %v1152 = vpop.f32.mrf.mxu0
        %v1153 = vadd.f32 0.0, %v1152
        %v1154 = vpop.f32.mrf.mxu0
        %1155 = vdwg.mxu0
        %1156 = vmatpush.bf16.msra.mxu0 0
        %1157 = vmatpush.bf16.msra.mxu0 0
        %1158 = vmatpush.bf16.msra.mxu0 0
        %1159 = vmatpush.bf16.msra.mxu0 0
        %1160 = vmatpush.bf16.msra.mxu0 0
        %1161 = vmatpush.bf16.msra.mxu0 %v1141
        %1162 = vmatpush.bf16.msra.mxu0 %v1134
        %1163 = vmatpush.bf16.msra.mxu0 %v1132
        %1164 = vmatmul.bf16.gmra.mxu0 %v635
        %v1165 = vpop.f32.mrf.mxu0
        %v1166 = vadd.f32 0.0, %v1165
        %v1167 = vpop.f32.mrf.mxu0
        %1168 = vdwg.mxu0
        %vm1169 = vcmp.ge.f32.partialorder %v1153, 0.0
        %vm1170 = vcmp.ge.f32.partialorder %v1166, 0.0
        %v1171 = vmul.f32 %v1153, 0.2
        %v1172 = vmul.f32 %v1166, 0.2
        %v1173 = vsel %vm1169, %v1153, %v1171
        %v1174 = vsel %vm1170, %v1166, %v1172
        %1177 = vrot.lane.b32.xlu0 %v1173, 17
        %v1178 = vpop.permute.xlu0 %1177
        %1179 = vrot.lane.b32.xlu0 %v1174, 17
        %v1180 = vpop.permute.xlu0 %1179
        %v1181 = vsel %vm418, %v1178, %v1180
        %v1185 = vsel %vm418, 0.0, %v1178
        %v1186 = vsel %vm418, %v1180, 0.0
        %v1187 = vmul.f32 %v1185, %v430
        %v1188 = vmul.f32 %v1181, %v431
        %v1189 = vmul.f32 %v1185, %v443
        %v1190 = vmul.f32 %v1181, %v447
        %v1191 = vmul.f32 %v1186, %v445
        %v1192 = vmul.f32 %v1185, %v457
        %v1193 = vmul.f32 %v1181, %v461
        %v1194 = vmul.f32 %v1186, %v459
        %v1195 = vmul.f32 %v1185, %v469
        %v1196 = vmul.f32 %v1181, %v473
        %v1197 = vmul.f32 %v1186, %v471
        %v1198 = vmul.f32 %v1185, %v481
        %v1199 = vmul.f32 %v1181, %v485
        %v1200 = vmul.f32 %v1186, %v483
        %v1201 = vmul.f32 %v1185, %v493
        %v1202 = vmul.f32 %v1181, %v497
        %v1203 = vmul.f32 %v1186, %v495
        %1206 = vrot.lane.b32.xlu0 %v1185, 127
        %v1207 = vpop.permute.xlu0 %1206
        %1208 = vrot.lane.b32.xlu0 %v1181, 127
        %v1209 = vpop.permute.xlu0 %1208
        %1210 = vrot.lane.b32.xlu0 %v1186, 127
        %v1211 = vpop.permute.xlu0 %1210
        %v1212 = vsel %vm515, %v1207, %v1209
        %v1213 = vsel %vm515, %v1209, %v1211
        %1219 = vrot.lane.b32.xlu0 %v1189, 126
        %v1220 = vpop.permute.xlu0 %1219
        %1221 = vrot.lane.b32.xlu0 %v1190, 126
        %v1222 = vpop.permute.xlu0 %1221
        %1223 = vrot.lane.b32.xlu0 %v1191, 126
        %v1224 = vpop.permute.xlu0 %1223
        %v1225 = vsel %vm529, %v1220, %v1222
        %v1226 = vsel %vm529, %v1222, %v1224
        %1232 = vrot.lane.b32.xlu0 %v1192, 112
        %v1233 = vpop.permute.xlu0 %1232
        %1234 = vrot.lane.b32.xlu0 %v1193, 112
        %v1235 = vpop.permute.xlu0 %1234
        %1236 = vrot.lane.b32.xlu0 %v1194, 112
        %v1237 = vpop.permute.xlu0 %1236
        %v1238 = vsel %vm546, %v1233, %v1235
        %v1239 = vsel %vm546, %v1235, %v1237
        %1242 = vrot.lane.b32.xlu0 %v1185, 111
        %v1243 = vpop.permute.xlu0 %1242
        %1244 = vrot.lane.b32.xlu0 %v1181, 111
        %v1245 = vpop.permute.xlu0 %1244
        %1246 = vrot.lane.b32.xlu0 %v1186, 111
        %v1247 = vpop.permute.xlu0 %1246
        %v1248 = vsel %vm557, %v1243, %v1245
        %v1249 = vsel %vm557, %v1245, %v1247
        %1255 = vrot.lane.b32.xlu0 %v1195, 110
        %v1256 = vpop.permute.xlu0 %1255
        %1257 = vrot.lane.b32.xlu0 %v1196, 110
        %v1258 = vpop.permute.xlu0 %1257
        %1259 = vrot.lane.b32.xlu0 %v1197, 110
        %v1260 = vpop.permute.xlu0 %1259
        %v1261 = vsel %vm574, %v1256, %v1258
        %v1262 = vsel %vm574, %v1258, %v1260
        %1268 = vrot.lane.b32.xlu0 %v1198, 96
        %v1269 = vpop.permute.xlu0 %1268
        %1270 = vrot.lane.b32.xlu0 %v1199, 96
        %v1271 = vpop.permute.xlu0 %1270
        %1272 = vrot.lane.b32.xlu0 %v1200, 96
        %v1273 = vpop.permute.xlu0 %1272
        %v1274 = vsel %vm588, %v1269, %v1271
        %v1275 = vsel %vm588, %v1271, %v1273
        %1278 = vrot.lane.b32.xlu0 %v1185, 95
        %v1279 = vpop.permute.xlu0 %1278
        %1280 = vrot.lane.b32.xlu0 %v1181, 95
        %v1281 = vpop.permute.xlu0 %1280
        %1282 = vrot.lane.b32.xlu0 %v1186, 95
        %v1283 = vpop.permute.xlu0 %1282
        %v1284 = vsel %vm599, %v1279, %v1281
        %v1285 = vsel %vm599, %v1281, %v1283
        %1291 = vrot.lane.b32.xlu0 %v1201, 94
        %v1292 = vpop.permute.xlu0 %1291
        %1293 = vrot.lane.b32.xlu0 %v1202, 94
        %v1294 = vpop.permute.xlu0 %1293
        %1295 = vrot.lane.b32.xlu0 %v1203, 94
        %v1296 = vpop.permute.xlu0 %1295
        %v1297 = vsel %vm613, %v1292, %v1294
        %v1298 = vsel %vm613, %v1294, %v1296
        %v1301 = vpack.c.bf16 %v1212, %v1187
        %v1302 = vpack.c.bf16 %v1213, %v1188
        %v1303 = vpack.c.bf16 %v1238, %v1225
        %v1304 = vpack.c.bf16 %v1239, %v1226
        %v1305 = vpack.c.bf16 %v1261, %v1248
        %v1306 = vpack.c.bf16 %v1262, %v1249
        %v1307 = vpack.c.bf16 %v1284, %v1274
        %v1308 = vpack.c.bf16 %v1285, %v1275
        %v1309 = vpack.c.bf16 %v1297, %v1297
        %v1310 = vpack.c.bf16 %v1298, %v1298
        %v1312 = vsel %vm618, %v1309, 0
        %v1315 = vsel %vm618, %v1310, 0
        %1317 = vmatpush.bf16.msra.mxu0 0
        %1318 = vmatpush.bf16.msra.mxu0 0
        %1319 = vmatpush.bf16.msra.mxu0 0
        %1320 = vmatpush.bf16.msra.mxu0 %v1312
        %1321 = vmatpush.bf16.msra.mxu0 %v1307
        %1322 = vmatpush.bf16.msra.mxu0 %v1305
        %1323 = vmatpush.bf16.msra.mxu0 %v1303
        %1324 = vmatpush.bf16.msra.mxu0 %v1301
        %1325 = vmatmul.bf16.gmra.mxu0 %v819
        %v1326 = vpop.f32.mrf.mxu0
        %v1327 = vadd.f32 %v815, %v1326
        %v1328 = vpop.f32.mrf.mxu0
        %1329 = vdwg.mxu0
        %1330 = vmatpush.bf16.msra.mxu0 0
        %1331 = vmatpush.bf16.msra.mxu0 0
        %1332 = vmatpush.bf16.msra.mxu0 0
        %1333 = vmatpush.bf16.msra.mxu0 %v1315
        %1334 = vmatpush.bf16.msra.mxu0 %v1308
        %1335 = vmatpush.bf16.msra.mxu0 %v1306
        %1336 = vmatpush.bf16.msra.mxu0 %v1304
        %1337 = vmatpush.bf16.msra.mxu0 %v1302
        %1338 = vmatmul.bf16.gmra.mxu0 %v819
        %v1339 = vpop.f32.mrf.mxu0
        %v1340 = vadd.f32 %v815, %v1339
        %v1341 = vpop.f32.mrf.mxu0
        %1342 = vdwg.mxu0
        %vm1343 = vcmp.ge.f32.partialorder %v1327, 0.0
        %vm1344 = vcmp.ge.f32.partialorder %v1340, 0.0
        %v1345 = vmul.f32 %v1327, 0.2
        %v1346 = vmul.f32 %v1340, 0.2
        %v1347 = vsel %vm1343, %v1327, %v1345
        %v1348 = vsel %vm1344, %v1340, %v1346
        %1351 = vrot.lane.b32.xlu0 %v1347, 17
        %v1352 = vpop.permute.xlu0 %1351
        %1353 = vrot.lane.b32.xlu0 %v1348, 17
        %v1354 = vpop.permute.xlu0 %1353
        %v1355 = vsel %vm418, %v1352, %v1354
        %v1359 = vsel %vm418, 0.0, %v1352
        %v1360 = vsel %vm418, %v1354, 0.0
        %v1361 = vmul.f32 %v1359, %v430
        %v1362 = vmul.f32 %v1355, %v431
        %v1363 = vmul.f32 %v1359, %v443
        %v1364 = vmul.f32 %v1355, %v447
        %v1365 = vmul.f32 %v1360, %v445
        %v1366 = vmul.f32 %v1359, %v457
        %v1367 = vmul.f32 %v1355, %v461
        %v1368 = vmul.f32 %v1360, %v459
        %v1369 = vmul.f32 %v1359, %v469
        %v1370 = vmul.f32 %v1355, %v473
        %v1371 = vmul.f32 %v1360, %v471
        %v1372 = vmul.f32 %v1359, %v481
        %v1373 = vmul.f32 %v1355, %v485
        %v1374 = vmul.f32 %v1360, %v483
        %v1375 = vmul.f32 %v1359, %v493
        %v1376 = vmul.f32 %v1355, %v497
        %v1377 = vmul.f32 %v1360, %v495
        %1380 = vrot.lane.b32.xlu0 %v1359, 127
        %v1381 = vpop.permute.xlu0 %1380
        %1382 = vrot.lane.b32.xlu0 %v1355, 127
        %v1383 = vpop.permute.xlu0 %1382
        %1384 = vrot.lane.b32.xlu0 %v1360, 127
        %v1385 = vpop.permute.xlu0 %1384
        %v1386 = vsel %vm515, %v1381, %v1383
        %v1387 = vsel %vm515, %v1383, %v1385
        %1393 = vrot.lane.b32.xlu0 %v1363, 126
        %v1394 = vpop.permute.xlu0 %1393
        %1395 = vrot.lane.b32.xlu0 %v1364, 126
        %v1396 = vpop.permute.xlu0 %1395
        %1397 = vrot.lane.b32.xlu0 %v1365, 126
        %v1398 = vpop.permute.xlu0 %1397
        %v1399 = vsel %vm529, %v1394, %v1396
        %v1400 = vsel %vm529, %v1396, %v1398
        %1406 = vrot.lane.b32.xlu0 %v1366, 112
        %v1407 = vpop.permute.xlu0 %1406
        %1408 = vrot.lane.b32.xlu0 %v1367, 112
        %v1409 = vpop.permute.xlu0 %1408
        %1410 = vrot.lane.b32.xlu0 %v1368, 112
        %v1411 = vpop.permute.xlu0 %1410
        %v1412 = vsel %vm546, %v1407, %v1409
        %v1413 = vsel %vm546, %v1409, %v1411
        %1416 = vrot.lane.b32.xlu0 %v1359, 111
        %v1417 = vpop.permute.xlu0 %1416
        %1418 = vrot.lane.b32.xlu0 %v1355, 111
        %v1419 = vpop.permute.xlu0 %1418
        %1420 = vrot.lane.b32.xlu0 %v1360, 111
        %v1421 = vpop.permute.xlu0 %1420
        %v1422 = vsel %vm557, %v1417, %v1419
        %v1423 = vsel %vm557, %v1419, %v1421
        %1429 = vrot.lane.b32.xlu0 %v1369, 110
        %v1430 = vpop.permute.xlu0 %1429
        %1431 = vrot.lane.b32.xlu0 %v1370, 110
        %v1432 = vpop.permute.xlu0 %1431
        %1433 = vrot.lane.b32.xlu0 %v1371, 110
        %v1434 = vpop.permute.xlu0 %1433
        %v1435 = vsel %vm574, %v1430, %v1432
        %v1436 = vsel %vm574, %v1432, %v1434
        %1442 = vrot.lane.b32.xlu0 %v1372, 96
        %v1443 = vpop.permute.xlu0 %1442
        %1444 = vrot.lane.b32.xlu0 %v1373, 96
        %v1445 = vpop.permute.xlu0 %1444
        %1446 = vrot.lane.b32.xlu0 %v1374, 96
        %v1447 = vpop.permute.xlu0 %1446
        %v1448 = vsel %vm588, %v1443, %v1445
        %v1449 = vsel %vm588, %v1445, %v1447
        %1452 = vrot.lane.b32.xlu0 %v1359, 95
        %v1453 = vpop.permute.xlu0 %1452
        %1454 = vrot.lane.b32.xlu0 %v1355, 95
        %v1455 = vpop.permute.xlu0 %1454
        %1456 = vrot.lane.b32.xlu0 %v1360, 95
        %v1457 = vpop.permute.xlu0 %1456
        %v1458 = vsel %vm599, %v1453, %v1455
        %v1459 = vsel %vm599, %v1455, %v1457
        %1465 = vrot.lane.b32.xlu0 %v1375, 94
        %v1466 = vpop.permute.xlu0 %1465
        %1467 = vrot.lane.b32.xlu0 %v1376, 94
        %v1468 = vpop.permute.xlu0 %1467
        %1469 = vrot.lane.b32.xlu0 %v1377, 94
        %v1470 = vpop.permute.xlu0 %1469
        %v1471 = vsel %vm613, %v1466, %v1468
        %v1472 = vsel %vm613, %v1468, %v1470
        %v1475 = vpack.c.bf16 %v896, %v871
        %v1476 = vpack.c.bf16 %v897, %v872
        %v1477 = vpack.c.bf16 %v922, %v909
        %v1478 = vpack.c.bf16 %v923, %v910
        %v1479 = vpack.c.bf16 %v945, %v932
        %v1480 = vpack.c.bf16 %v946, %v933
        %v1481 = vpack.c.bf16 %v968, %v958
        %v1482 = vpack.c.bf16 %v969, %v959
        %v1483 = vpack.c.bf16 %v1361, %v981
        %v1484 = vpack.c.bf16 %v1362, %v982
        %v1485 = vpack.c.bf16 %v1399, %v1386
        %v1486 = vpack.c.bf16 %v1400, %v1387
        %v1487 = vpack.c.bf16 %v1422, %v1412
        %v1488 = vpack.c.bf16 %v1423, %v1413
        %v1489 = vpack.c.bf16 %v1448, %v1435
        %v1490 = vpack.c.bf16 %v1449, %v1436
        %v1491 = vpack.c.bf16 %v1471, %v1458
        %v1492 = vpack.c.bf16 %v1472, %v1459
        %1494 = vset.pattern.permute.xlu0 0
        %1495 = vperm.xlu0 %1494, %v408
        %v1496 = vpop.permute.xlu0 %1495
        %v1499 = vunpack.c.l.b16 %v406
        %v1500 = vunpack.c.h.b16 %v406
        %v1501 = vpack.c.b16 %v1499, %v1499
        %v1502 = vpack.c.b16 %v1500, %v1500
        %v1505 = vsel %vm460, %v1502, 0
        %1507 = vmatpush.bf16.msra.mxu0 %v1489
        %1508 = vmatpush.bf16.msra.mxu0 %v1487
        %1509 = vmatpush.bf16.msra.mxu0 %v1485
        %1510 = vmatpush.bf16.msra.mxu0 %v1483
        %1511 = vmatpush.bf16.msra.mxu0 %v1481
        %1512 = vmatpush.bf16.msra.mxu0 %v1479
        %1513 = vmatpush.bf16.msra.mxu0 %v1477
        %1514 = vmatpush.bf16.msra.mxu0 %v1475
        %1515 = vmatmul.bf16.gmra.mxu0 %v1501
        %v1516 = vpop.f32.mrf.mxu0
        %v1517 = vadd.f32 %v1496, %v1516
        %v1518 = vpop.f32.mrf.mxu0
        %1519 = vdwg.mxu0
        %1520 = vmatpush.bf16.msra.mxu0 0
        %1521 = vmatpush.bf16.msra.mxu0 0
        %1522 = vmatpush.bf16.msra.mxu0 0
        %1523 = vmatpush.bf16.msra.mxu0 0
        %1524 = vmatpush.bf16.msra.mxu0 0
        %1525 = vmatpush.bf16.msra.mxu0 0
        %1526 = vmatpush.bf16.msra.mxu0 0
        %1527 = vmatpush.bf16.msra.mxu0 %v1491
        %1528 = vmatmul.bf16.gmra.mxu0 %v1505
        %v1529 = vpop.f32.mrf.mxu0
        %v1530 = vadd.f32 %v1517, %v1529
        %v1531 = vpop.f32.mrf.mxu0
        %1532 = vdwg.mxu0
        %1533 = vmatpush.bf16.msra.mxu0 %v1490
        %1534 = vmatpush.bf16.msra.mxu0 %v1488
        %1535 = vmatpush.bf16.msra.mxu0 %v1486
        %1536 = vmatpush.bf16.msra.mxu0 %v1484
        %1537 = vmatpush.bf16.msra.mxu0 %v1482
        %1538 = vmatpush.bf16.msra.mxu0 %v1480
        %1539 = vmatpush.bf16.msra.mxu0 %v1478
        %1540 = vmatpush.bf16.msra.mxu0 %v1476
        %1541 = vmatmul.bf16.gmra.mxu0 %v1501
        %v1542 = vpop.f32.mrf.mxu0
        %v1543 = vadd.f32 %v1496, %v1542
        %v1544 = vpop.f32.mrf.mxu0
        %1545 = vdwg.mxu0
        %1546 = vmatpush.bf16.msra.mxu0 0
        %1547 = vmatpush.bf16.msra.mxu0 0
        %1548 = vmatpush.bf16.msra.mxu0 0
        %1549 = vmatpush.bf16.msra.mxu0 0
        %1550 = vmatpush.bf16.msra.mxu0 0
        %1551 = vmatpush.bf16.msra.mxu0 0
        %1552 = vmatpush.bf16.msra.mxu0 0
        %1553 = vmatpush.bf16.msra.mxu0 %v1492
        %1554 = vmatmul.bf16.gmra.mxu0 %v1505
        %v1555 = vpop.f32.mrf.mxu0
        %v1556 = vadd.f32 %v1543, %v1555
        %v1557 = vpop.f32.mrf.mxu0
        %1558 = vdwg.mxu0
        %vm1559 = vcmp.ge.f32.partialorder %v1530, 0.0
        %vm1560 = vcmp.ge.f32.partialorder %v1556, 0.0
        %v1561 = vmul.f32 %v1530, 0.2
        %v1562 = vmul.f32 %v1556, 0.2
        %v1563 = vsel %vm1559, %v1530, %v1561
        %v1564 = vsel %vm1560, %v1556, %v1562
        %1565 = vst [vmem:[%s396] sm:$0xff] %v1563
        %1566 = vst [vmem:[%s396 + $0x8] sm:$0xff] %v1564
        %s1567 = sand.u32 %s213, 1
        %s1568 = scalar_lea.sflag [#allocation4], %s1567
        %s1569 = sand.u32 %s213, 1
        %s1570 = smul.addr %s1569, 16
        %s1571 = scalar_lea.vmem [#allocation11], %s1570
        // Predicated region
        $region73: #{tpu_custom_call.1} parent=51 // pred_check
          %p1572 = pneg %p223
        $region74: #{tpu_custom_call.1} parent=51 // pred_check_branch
          %1574 = sbr.rel (%p1572) target = $region76
        $region75: #{tpu_custom_call.1} parent=51 // pred_region
          %1576 = vsyncadd %s1568, 0
          %s1577 = smul.addr %s27, 2
          %s1578 = smul.addr %s1577, 8
          %s1579 = scalar_lea.hbm %s8, %s1578
          %s1581 = sshll.u32 %s1571, 4
          %s1582 = int_to_ptr.vmem [resolvable:$true] %s1581
          %s1583 = sshll.u32 %s1579, 4
          %s1584 = int_to_ptr.hbm [resolvable:$true] %s1583
          %1586 = dma.vmem_to_hbm [thread:$0]  %s1582, 256, %s1584, %s1568
        $region76: #{tpu_custom_call.1} parent=51 // pred_fallthru
          _
      $region52: #{tpu_custom_call.1} parent=5 // pred_fallthru
        _
      %p1587 = scmp.le.s32.totalorder 2, %s22
      // Predicated region
      $region77: #{tpu_custom_call.1} parent=5 // pred_check
        %p1588 = pneg %p1587
      $region78: #{tpu_custom_call.1} parent=5 // pred_check_branch
        %1590 = sbr.rel (%p1588) target = $region80
      $region79: #{tpu_custom_call.1} parent=5 // pred_region
        %s1591 = ssub.s32 %s22, 2
        // Predicated region
        $region81: #{tpu_custom_call.1} parent=79 // pred_check
          %p1592 = pneg %p229
        $region82: #{tpu_custom_call.1} parent=79 // pred_check_branch
          %1594 = sbr.rel (%p1592) target = $region84
        $region83: #{tpu_custom_call.1} parent=79 // pred_region
          %s1595 = sand.u32 %s214, 1
          %s1596 = scalar_lea.sflag [#allocation4], %s1595
          %s1597 = sand.u32 %s214, 1
          %s1598 = smul.addr %s1597, 16
          %s1599 = scalar_lea.vmem [#allocation11], %s1598
          %1601 = dma.done %s1596, 256
        $region84: #{tpu_custom_call.1} parent=79 // pred_fallthru
          _
      $region80: #{tpu_custom_call.1} parent=5 // pred_fallthru
        _
    $region6: #{tpu_custom_call.1} parent=1 // loop_footer
      %s26 = sadd.s32 1, %s22
    $region7: #{tpu_custom_call.1} parent=1 // loop_footer_branch
      %21 = sbr.rel target = $region3
    $region8: #{tpu_custom_call.1} parent=1 // loop_exit
      _
    %1602 = vsyncpa [#allocation3], 1
    %s1603 = scalar_lea.sflag [#allocation3], 1
    %1604 = vsyncpa %s1603, 1
    %1605 = vsyncpa [#allocation6], 1
    %1606 = vsyncpa [#allocation9], 1
    %1607 = vsyncpa [#allocation4], 1
    %s1608 = scalar_lea.sflag [#allocation4], 1
    %1609 = vsyncpa %s1608, 1

</llo_original>
